<compile_context>
chip_gen: v7x
topology: tpu7x:2x2x1
jax: 0.10.0
libtpu: 0.0.40
codegen_flags: <defaults>
</compile_context>

<pallas_src>
import functools

import jax
import jax.numpy as jnp
from jax.experimental import pallas as pl
from jax.experimental.pallas import tpu as pltpu


def _rate_rnn_kernel(x_ref, noise_ref, h0_ref, wih_t_ref, whh_t_ref, mdiag_ref,
                     who_t_ref, bho_ref, out_ref, hidden_ref,
                     h_carry, work_buf, *, alpha):
    """One time-block of the Dale rate-RNN recurrence + output head.

    Per-grid-step block shapes:
      x_ref:      (Ts, B, I)   noise_ref:  (Ts, B, H)
      h0_ref:     (B, H)       wih_t_ref:  (I, H)
      whh_t_ref:  (H, H)       mdiag_ref:  (1, H)     diag of Dale's mask (+/-1)
      who_t_ref:  (H, O)       bho_ref:    (1, O)
      out_ref:    (Ts, B, O)   hidden_ref: (Ts, B, H)
      h_carry:    VMEM (B, H)      hidden state carried across time blocks
      work_buf:   VMEM (Ts, B, H)  holds drive[t] before step t, sigmoid(h) after
    """
    ts, b, i = x_ref.shape
    h_dim = whh_t_ref.shape[0]

    # Initialize the carried hidden state on the first time block.
    @pl.when(pl.program_id(0) == 0)
    def _():
        h_carry[...] = h0_ref[...]

    # --- Hoisted out of the serial recurrence: input projection + noise scale ---
    # One (Ts*B, I) x (I, H) MXU matmul + one fused VPU pass per time block.
    drive = (alpha * jnp.dot(x_ref[...].reshape(ts * b, i), wih_t_ref[...],
                             preferred_element_type=jnp.float32).reshape(ts, b, h_dim)
             + 0.01 * noise_ref[...])
    work_buf[...] = drive  # work_buf[t] is consumed at step t, then reused for sigmoid

    # --- Hoisted loop invariants ---
    whh_t = whh_t_ref[...]          # (H, H)
    mdiag = mdiag_ref[...]          # (1, H), broadcasts over batch
    beta = 1.0 - alpha

    def step(t, carry):
        h, sig_h = carry            # sig_h == sigmoid(h), reused from previous step
        rec = jnp.dot(sig_h, whh_t, preferred_element_type=jnp.float32)   # (B, H)
        rec = jnp.maximum(rec, 0.0) * mdiag       # ReLU, then @ diag(Dale mask)
        h_new = beta * h + alpha * rec + work_buf[t]
        sig_new = jax.nn.sigmoid(h_new)           # reused next step AND by the head
        hidden_ref[t] = h_new
        work_buf[t] = sig_new                     # slot t no longer needed for drive
        return h_new, sig_new

    h0 = h_carry[...]
    carry = jax.lax.fori_loop(0, ts, step, (h0, jax.nn.sigmoid(h0)),
                              unroll=True if ts <= 8 else 4)
    h_carry[...] = carry[0]

    # --- Output head on the whole time block (non-recurrent, one matmul) ---
    # softmax(sigmoid(hidden) @ W_ho^T + b_ho); sigmoid already in work_buf.
    sig = work_buf[...].reshape(ts * b, h_dim)
    logits = jnp.dot(sig, who_t_ref[...],
                     preferred_element_type=jnp.float32) + bho_ref[...]
    logits = logits - jnp.max(logits, axis=-1, keepdims=True)
    e = jnp.exp(logits)
    inv = pl.reciprocal(jnp.sum(e, axis=-1, keepdims=True), approx=True)
    out_ref[...] = (e * inv).reshape(ts, b, -1)


def rate_rnn_dale_forward(x, h0, noise, W_ih, W_hh, mask_diag, W_ho, b_ho, dt, tau,
                          *, time_block=None):
    """x: (B, S, I), h0: (B, 1, H), noise: (B, S, H) -> (out (B,S,O), hidden (B,S,H))."""
    B, S, I = x.shape
    H = W_hh.shape[0]
    O = W_ho.shape[0]
    alpha = float(dt) / float(tau)

    ts = time_block if time_block is not None else min(S, 32)
    ts = max(1, min(ts, S))
    num_blocks = pl.cdiv(S, ts)
    S_pad = num_blocks * ts

    # Time-major layout so each recurrence step touches a contiguous (B, H) tile.
    x_sb = jnp.transpose(x, (1, 0, 2)).astype(jnp.float32)          # (S, B, I)
    noise_sb = jnp.transpose(noise, (1, 0, 2)).astype(jnp.float32)  # (S, B, H)
    if S_pad != S:
        pad = S_pad - S
        x_sb = jnp.pad(x_sb, ((0, pad), (0, 0), (0, 0)))
        noise_sb = jnp.pad(noise_sb, ((0, pad), (0, 0), (0, 0)))
    h0_2d = h0[:, 0, :].astype(jnp.float32)                         # (B, H)

    kernel = functools.partial(_rate_rnn_kernel, alpha=alpha)

    # NOTE: for large batch on v7x one would add a leading "parallel" batch grid axis
    # to shard across the two TensorCores; at B=2 it is not worthwhile.
    out_sb, hid_sb = pl.pallas_call(
        kernel,
        grid=(num_blocks,),
        out_shape=(jax.ShapeDtypeStruct((S_pad, B, O), jnp.float32),
                   jax.ShapeDtypeStruct((S_pad, B, H), jnp.float32)),
        in_specs=[
            pl.BlockSpec((ts, B, I), lambda t: (t, 0, 0)),   # x (time-blocked)
            pl.BlockSpec((ts, B, H), lambda t: (t, 0, 0)),   # noise (time-blocked)
            pl.BlockSpec((B, H), lambda t: (0, 0)),          # h0 (resident)
            pl.BlockSpec((I, H), lambda t: (0, 0)),          # W_ih^T (resident)
            pl.BlockSpec((H, H), lambda t: (0, 0)),          # W_hh^T (resident)
            pl.BlockSpec((1, H), lambda t: (0, 0)),          # Dale mask diag
            pl.BlockSpec((H, O), lambda t: (0, 0)),          # W_ho^T (resident)
            pl.BlockSpec((1, O), lambda t: (0, 0)),          # b_ho
        ],
        out_specs=(pl.BlockSpec((ts, B, O), lambda t: (t, 0, 0)),
                   pl.BlockSpec((ts, B, H), lambda t: (t, 0, 0))),
        scratch_shapes=[pltpu.VMEM((B, H), jnp.float32),       # carried hidden state
                        pltpu.VMEM((ts, B, H), jnp.float32)],  # drive / sigmoid buffer
        compiler_params=pltpu.CompilerParams(
            dimension_semantics=("arbitrary",)),               # time axis is a recurrence
    )(x_sb, noise_sb, h0_2d,
      W_ih.T.astype(jnp.float32), W_hh.T.astype(jnp.float32),
      mask_diag[None, :].astype(jnp.float32),
      W_ho.T.astype(jnp.float32), b_ho[None, :].astype(jnp.float32))

    out = jnp.transpose(out_sb[:S], (1, 0, 2))
    hidden = jnp.transpose(hid_sb[:S], (1, 0, 2))
    return out, hidden


def rate_rnn_dale_reference(x, h0, noise, W_ih, W_hh, mask_diag, W_ho, b_ho, dt, tau):
    """Pure-JAX reference mirroring the PyTorch forward."""
    alpha = float(dt) / float(tau)

    def step(h, inp):
        x_t, n_t = inp
        rec = jnp.maximum(jax.nn.sigmoid(h) @ W_hh.T, 0.0) * mask_diag
        ih = x_t @ W_ih.T
        h_new = (1.0 - alpha) * h + alpha * (rec + ih) + n_t * 0.01
        return h_new, h_new

    _, hid_sb = jax.lax.scan(step, h0[:, 0, :],
                             (jnp.transpose(x, (1, 0, 2)),
                              jnp.transpose(noise, (1, 0, 2))))
    hidden = jnp.transpose(hid_sb, (1, 0, 2))
    logits = jax.nn.sigmoid(hidden) @ W_ho.T + b_ho
    out = jax.nn.softmax(logits, axis=2)
    return out, hidden


if __name__ == "__main__":
    # Small shapes consistent with the module's forward.
    B, S, I, H, O = 2, 8, 4, 32, 4
    tau, dt, P_inh = 100.0, 10.0, 0.2

    key = jax.random.PRNGKey(0)
    k_x, k_h, k_n, k_wih, k_whh, k_who, k_bho, k_inh = jax.random.split(key, 8)

    x = jax.random.normal(k_x, (B, S, I), dtype=jnp.float32)
    h0 = jax.random.normal(k_h, (B, 1, H), dtype=jnp.float32) * 0.1
    noise = jax.random.normal(k_n, (B, S, H), dtype=jnp.float32)   # torch.randn stand-in

    W_ih = jax.random.normal(k_wih, (H, I), dtype=jnp.float32) / jnp.sqrt(I)
    W_hh = jax.random.normal(k_whh, (H, H), dtype=jnp.float32) / jnp.sqrt(H)
    W_ho = jax.random.normal(k_who, (O, H), dtype=jnp.float32) / jnp.sqrt(H)
    b_ho = jax.random.normal(k_bho, (O,), dtype=jnp.float32) * 0.01

    inh = jax.random.uniform(k_inh, (H,)) < P_inh                  # Dale's rule mask diag
    mask_diag = jnp.where(inh, -1.0, 1.0).astype(jnp.float32)

    # time_block=4 -> grid of 2 time blocks, exercising the carried-state pipeline.
    out, hidden = rate_rnn_dale_forward(x, h0, noise, W_ih, W_hh, mask_diag,
                                        W_ho, b_ho, dt, tau, time_block=4)
    out = jax.block_until_ready(out)
    hidden = jax.block_until_ready(hidden)

    out_ref, hidden_ref = rate_rnn_dale_reference(x, h0, noise, W_ih, W_hh, mask_diag,
                                                  W_ho, b_ho, dt, tau)

    assert out.shape == (B, S, O) and hidden.shape == (B, S, H)
    assert jnp.allclose(hidden, hidden_ref, atol=1e-4, rtol=1e-4)
    # out uses the approximate EUP reciprocal for the softmax normalization.
    assert jnp.allclose(out, out_ref, atol=1e-3, rtol=1e-3)
    print("KERNEL_OK")
</pallas_src>

<mosaic_0001>
module attributes {stable_mosaic.version = 11 : i64} {
  func.func @_rate_rnn_kernel(%arg0: i32, %arg1: memref<4x2x4xf32, #tpu.memory_space<vmem>>, %arg2: memref<4x2x32xf32, #tpu.memory_space<vmem>>, %arg3: memref<2x32xf32, #tpu.memory_space<vmem>>, %arg4: memref<4x32xf32, #tpu.memory_space<vmem>>, %arg5: memref<32x32xf32, #tpu.memory_space<vmem>>, %arg6: memref<1x32xf32, #tpu.memory_space<vmem>>, %arg7: memref<32x4xf32, #tpu.memory_space<vmem>>, %arg8: memref<1x4xf32, #tpu.memory_space<vmem>>, %arg9: memref<4x2x4xf32, #tpu.memory_space<vmem>>, %arg10: memref<4x2x32xf32, #tpu.memory_space<vmem>>, %arg11: memref<2x32xf32, #tpu.memory_space<vmem>>, %arg12: memref<4x2x32xf32, #tpu.memory_space<vmem>>) attributes {dimension_semantics = [#tpu.dimension_semantics<arbitrary>], iteration_bounds = array<i64: 2>, scalar_prefetch = 0 : i64, scratch_operands = 2 : i64, tpu.core_type = #tpu.core_type<tc>, window_params = [{transform_indices = @transform_0, window_bounds = array<i64: 4, 2, 4>}, {transform_indices = @transform_1, window_bounds = array<i64: 4, 2, 32>}, {pipeline_mode = #tpu.pipeline_mode<synchronous>, transform_indices = @transform_2, window_bounds = array<i64: 2, 32>}, {pipeline_mode = #tpu.pipeline_mode<synchronous>, transform_indices = @transform_3, window_bounds = array<i64: 4, 32>}, {pipeline_mode = #tpu.pipeline_mode<synchronous>, transform_indices = @transform_4, window_bounds = array<i64: 32, 32>}, {pipeline_mode = #tpu.pipeline_mode<synchronous>, transform_indices = @transform_5, window_bounds = array<i64: 1, 32>}, {pipeline_mode = #tpu.pipeline_mode<synchronous>, transform_indices = @transform_6, window_bounds = array<i64: 32, 4>}, {pipeline_mode = #tpu.pipeline_mode<synchronous>, transform_indices = @transform_7, window_bounds = array<i64: 1, 4>}, {transform_indices = @transform_8, window_bounds = array<i64: 4, 2, 4>}, {transform_indices = @transform_9, window_bounds = array<i64: 4, 2, 32>}]} {
    %c0_i32 = arith.constant 0 : i32
    %0 = arith.cmpi eq, %arg0, %c0_i32 : i32
    %1 = arith.extui %0 : i1 to i32
    %c0_i32_0 = arith.constant 0 : i32
    %2 = arith.cmpi ne, %1, %c0_i32_0 : i32
    scf.if %2 {
      %c0_80 = arith.constant 0 : index
      %c0_81 = arith.constant 0 : index
      %151 = vector.load %arg3[%c0_80, %c0_81] : memref<2x32xf32, #tpu.memory_space<vmem>>, vector<2x32xf32>
      %c0_82 = arith.constant 0 : index
      %c0_83 = arith.constant 0 : index
      %152 = vector.load %arg11[%c0_82, %c0_83] : memref<2x32xf32, #tpu.memory_space<vmem>>, vector<2x32xf32>
      tpu.vector_store %arg11[%c0_82, %c0_83], %151 {strides = array<i32>} : memref<2x32xf32, #tpu.memory_space<vmem>>, vector<2x32xf32>,
    } else {
    }
    %c0 = arith.constant 0 : index
    %c0_1 = arith.constant 0 : index
    %c0_2 = arith.constant 0 : index
    %3 = vector.load %arg1[%c0, %c0_1, %c0_2] : memref<4x2x4xf32, #tpu.memory_space<vmem>>, vector<4x2x4xf32>
    %4 = vector.shape_cast %3 : vector<4x2x4xf32> to vector<8x4xf32>
    %c0_3 = arith.constant 0 : index
    %c0_4 = arith.constant 0 : index
    %5 = vector.load %arg4[%c0_3, %c0_4] : memref<4x32xf32, #tpu.memory_space<vmem>>, vector<4x32xf32>
    %cst = arith.constant dense<0.000000e+00> : vector<8x32xf32>
    %6 = tpu.matmul %4, %5, %cst {dimension_numbers = #tpu.dot_dimension_numbers<[1], [0], [0], [1], [0, 0, 1, 1], [], []>} : vector<8x4xf32>, vector<4x32xf32>, vector<8x32xf32> -> vector<8x32xf32>
    %7 = vector.shape_cast %6 : vector<8x32xf32> to vector<4x2x32xf32>
    %cst_5 = arith.constant 1.000000e-01 : f32
    %8 = vector.broadcast %cst_5 : f32 to vector<4x2x32xf32>
    %9 = arith.mulf %8, %7 : vector<4x2x32xf32>
    %c0_6 = arith.constant 0 : index
    %c0_7 = arith.constant 0 : index
    %c0_8 = arith.constant 0 : index
    %10 = vector.load %arg2[%c0_6, %c0_7, %c0_8] : memref<4x2x32xf32, #tpu.memory_space<vmem>>, vector<4x2x32xf32>
    %cst_9 = arith.constant 0.00999999977 : f32
    %11 = vector.broadcast %cst_9 : f32 to vector<4x2x32xf32>
    %12 = arith.mulf %11, %10 : vector<4x2x32xf32>
    %13 = arith.addf %9, %12 : vector<4x2x32xf32>
    %c0_10 = arith.constant 0 : index
    %c0_11 = arith.constant 0 : index
    %c0_12 = arith.constant 0 : index
    %14 = vector.load %arg12[%c0_10, %c0_11, %c0_12] : memref<4x2x32xf32, #tpu.memory_space<vmem>>, vector<4x2x32xf32>
    tpu.vector_store %arg12[%c0_10, %c0_11, %c0_12], %13 {strides = array<i32>} : memref<4x2x32xf32, #tpu.memory_space<vmem>>, vector<4x2x32xf32>,
    %c0_13 = arith.constant 0 : index
    %c0_14 = arith.constant 0 : index
    %15 = vector.load %arg5[%c0_13, %c0_14] : memref<32x32xf32, #tpu.memory_space<vmem>>, vector<32x32xf32>
    %c0_15 = arith.constant 0 : index
    %c0_16 = arith.constant 0 : index
    %16 = vector.load %arg6[%c0_15, %c0_16] : memref<1x32xf32, #tpu.memory_space<vmem>>, vector<1x32xf32>
    %c0_17 = arith.constant 0 : index
    %c0_18 = arith.constant 0 : index
    %17 = vector.load %arg11[%c0_17, %c0_18] : memref<2x32xf32, #tpu.memory_space<vmem>>, vector<2x32xf32>
    %18 = arith.negf %17 : vector<2x32xf32>
    %19 = math.exp %18 : vector<2x32xf32>
    %cst_19 = arith.constant 1.000000e+00 : f32
    %20 = vector.broadcast %cst_19 : f32 to vector<2x32xf32>
    %21 = arith.addf %20, %19 : vector<2x32xf32>
    %22 = arith.divf %20, %21 : vector<2x32xf32>
    %c0_i32_20 = arith.constant 0 : i32
    %cst_21 = arith.constant dense<0.000000e+00> : vector<2x32xf32>
    %23 = tpu.matmul %22, %15, %cst_21 {dimension_numbers = #tpu.dot_dimension_numbers<[1], [0], [0], [1], [0, 0, 1, 1], [], []>} : vector<2x32xf32>, vector<32x32xf32>, vector<2x32xf32> -> vector<2x32xf32>
    %cst_22 = arith.constant 0.000000e+00 : f32
    %24 = vector.broadcast %cst_22 : f32 to vector<2x32xf32>
    %25 = arith.maximumf %23, %24 : vector<2x32xf32>
    %26 = vector.broadcast %16 : vector<1x32xf32> to vector<2x32xf32>
    %27 = arith.mulf %25, %26 : vector<2x32xf32>
    %cst_23 = arith.constant 0.899999976 : f32
    %28 = vector.broadcast %cst_23 : f32 to vector<2x32xf32>
    %29 = arith.mulf %28, %17 : vector<2x32xf32>
    %cst_24 = arith.constant 1.000000e-01 : f32
    %30 = vector.broadcast %cst_24 : f32 to vector<2x32xf32>
    %31 = arith.mulf %30, %27 : vector<2x32xf32>
    %32 = arith.addf %29, %31 : vector<2x32xf32>
    %33 = arith.index_cast %c0_i32_20 : i32 to index
    %c0_25 = arith.constant 0 : index
    %c0_26 = arith.constant 0 : index
    %34 = vector.load %arg12[%33, %c0_25, %c0_26] : memref<4x2x32xf32, #tpu.memory_space<vmem>>, vector<1x2x32xf32>
    %35 = vector.shape_cast %34 : vector<1x2x32xf32> to vector<2x32xf32>
    %36 = arith.addf %32, %35 : vector<2x32xf32>
    %37 = arith.negf %36 : vector<2x32xf32>
    %38 = math.exp %37 : vector<2x32xf32>
    %cst_27 = arith.constant 1.000000e+00 : f32
    %39 = vector.broadcast %cst_27 : f32 to vector<2x32xf32>
    %40 = arith.addf %39, %38 : vector<2x32xf32>
    %41 = arith.divf %39, %40 : vector<2x32xf32>
    %42 = arith.index_cast %c0_i32_20 : i32 to index
    %c0_28 = arith.constant 0 : index
    %c0_29 = arith.constant 0 : index
    %43 = vector.load %arg10[%42, %c0_28, %c0_29] : memref<4x2x32xf32, #tpu.memory_space<vmem>>, vector<1x2x32xf32>
    %44 = vector.shape_cast %43 : vector<1x2x32xf32> to vector<2x32xf32>
    %45 = vector.shape_cast %36 : vector<2x32xf32> to vector<1x2x32xf32>
    tpu.vector_store %arg10[%42, %c0_28, %c0_29], %45 {strides = array<i32>} : memref<4x2x32xf32, #tpu.memory_space<vmem>>, vector<1x2x32xf32>,
    %46 = arith.index_cast %c0_i32_20 : i32 to index
    %c0_30 = arith.constant 0 : index
    %c0_31 = arith.constant 0 : index
    %47 = vector.load %arg12[%46, %c0_30, %c0_31] : memref<4x2x32xf32, #tpu.memory_space<vmem>>, vector<1x2x32xf32>
    %48 = vector.shape_cast %47 : vector<1x2x32xf32> to vector<2x32xf32>
    %49 = vector.shape_cast %41 : vector<2x32xf32> to vector<1x2x32xf32>
    tpu.vector_store %arg12[%46, %c0_30, %c0_31], %49 {strides = array<i32>} : memref<4x2x32xf32, #tpu.memory_space<vmem>>, vector<1x2x32xf32>,
    %c1_i32 = arith.constant 1 : i32
    %cst_32 = arith.constant dense<0.000000e+00> : vector<2x32xf32>
    %50 = tpu.matmul %41, %15, %cst_32 {dimension_numbers = #tpu.dot_dimension_numbers<[1], [0], [0], [1], [0, 0, 1, 1], [], []>} : vector<2x32xf32>, vector<32x32xf32>, vector<2x32xf32> -> vector<2x32xf32>
    %cst_33 = arith.constant 0.000000e+00 : f32
    %51 = vector.broadcast %cst_33 : f32 to vector<2x32xf32>
    %52 = arith.maximumf %50, %51 : vector<2x32xf32>
    %53 = vector.broadcast %16 : vector<1x32xf32> to vector<2x32xf32>
    %54 = arith.mulf %52, %53 : vector<2x32xf32>
    %cst_34 = arith.constant 0.899999976 : f32
    %55 = vector.broadcast %cst_34 : f32 to vector<2x32xf32>
    %56 = arith.mulf %55, %36 : vector<2x32xf32>
    %cst_35 = arith.constant 1.000000e-01 : f32
    %57 = vector.broadcast %cst_35 : f32 to vector<2x32xf32>
    %58 = arith.mulf %57, %54 : vector<2x32xf32>
    %59 = arith.addf %56, %58 : vector<2x32xf32>
    %60 = arith.index_cast %c1_i32 : i32 to index
    %c0_36 = arith.constant 0 : index
    %c0_37 = arith.constant 0 : index
    %61 = vector.load %arg12[%60, %c0_36, %c0_37] : memref<4x2x32xf32, #tpu.memory_space<vmem>>, vector<1x2x32xf32>
    %62 = vector.shape_cast %61 : vector<1x2x32xf32> to vector<2x32xf32>
    %63 = arith.addf %59, %62 : vector<2x32xf32>
    %64 = arith.negf %63 : vector<2x32xf32>
    %65 = math.exp %64 : vector<2x32xf32>
    %cst_38 = arith.constant 1.000000e+00 : f32
    %66 = vector.broadcast %cst_38 : f32 to vector<2x32xf32>
    %67 = arith.addf %66, %65 : vector<2x32xf32>
    %68 = arith.divf %66, %67 : vector<2x32xf32>
    %69 = arith.index_cast %c1_i32 : i32 to index
    %c0_39 = arith.constant 0 : index
    %c0_40 = arith.constant 0 : index
    %70 = vector.load %arg10[%69, %c0_39, %c0_40] : memref<4x2x32xf32, #tpu.memory_space<vmem>>, vector<1x2x32xf32>
    %71 = vector.shape_cast %70 : vector<1x2x32xf32> to vector<2x32xf32>
    %72 = vector.shape_cast %63 : vector<2x32xf32> to vector<1x2x32xf32>
    tpu.vector_store %arg10[%69, %c0_39, %c0_40], %72 {strides = array<i32>} : memref<4x2x32xf32, #tpu.memory_space<vmem>>, vector<1x2x32xf32>,
    %73 = arith.index_cast %c1_i32 : i32 to index
    %c0_41 = arith.constant 0 : index
    %c0_42 = arith.constant 0 : index
    %74 = vector.load %arg12[%73, %c0_41, %c0_42] : memref<4x2x32xf32, #tpu.memory_space<vmem>>, vector<1x2x32xf32>
    %75 = vector.shape_cast %74 : vector<1x2x32xf32> to vector<2x32xf32>
    %76 = vector.shape_cast %68 : vector<2x32xf32> to vector<1x2x32xf32>
    tpu.vector_store %arg12[%73, %c0_41, %c0_42], %76 {strides = array<i32>} : memref<4x2x32xf32, #tpu.memory_space<vmem>>, vector<1x2x32xf32>,
    %c2_i32 = arith.constant 2 : i32
    %cst_43 = arith.constant dense<0.000000e+00> : vector<2x32xf32>
    %77 = tpu.matmul %68, %15, %cst_43 {dimension_numbers = #tpu.dot_dimension_numbers<[1], [0], [0], [1], [0, 0, 1, 1], [], []>} : vector<2x32xf32>, vector<32x32xf32>, vector<2x32xf32> -> vector<2x32xf32>
    %cst_44 = arith.constant 0.000000e+00 : f32
    %78 = vector.broadcast %cst_44 : f32 to vector<2x32xf32>
    %79 = arith.maximumf %77, %78 : vector<2x32xf32>
    %80 = vector.broadcast %16 : vector<1x32xf32> to vector<2x32xf32>
    %81 = arith.mulf %79, %80 : vector<2x32xf32>
    %cst_45 = arith.constant 0.899999976 : f32
    %82 = vector.broadcast %cst_45 : f32 to vector<2x32xf32>
    %83 = arith.mulf %82, %63 : vector<2x32xf32>
    %cst_46 = arith.constant 1.000000e-01 : f32
    %84 = vector.broadcast %cst_46 : f32 to vector<2x32xf32>
    %85 = arith.mulf %84, %81 : vector<2x32xf32>
    %86 = arith.addf %83, %85 : vector<2x32xf32>
    %87 = arith.index_cast %c2_i32 : i32 to index
    %c0_47 = arith.constant 0 : index
    %c0_48 = arith.constant 0 : index
    %88 = vector.load %arg12[%87, %c0_47, %c0_48] : memref<4x2x32xf32, #tpu.memory_space<vmem>>, vector<1x2x32xf32>
    %89 = vector.shape_cast %88 : vector<1x2x32xf32> to vector<2x32xf32>
    %90 = arith.addf %86, %89 : vector<2x32xf32>
    %91 = arith.negf %90 : vector<2x32xf32>
    %92 = math.exp %91 : vector<2x32xf32>
    %cst_49 = arith.constant 1.000000e+00 : f32
    %93 = vector.broadcast %cst_49 : f32 to vector<2x32xf32>
    %94 = arith.addf %93, %92 : vector<2x32xf32>
    %95 = arith.divf %93, %94 : vector<2x32xf32>
    %96 = arith.index_cast %c2_i32 : i32 to index
    %c0_50 = arith.constant 0 : index
    %c0_51 = arith.constant 0 : index
    %97 = vector.load %arg10[%96, %c0_50, %c0_51] : memref<4x2x32xf32, #tpu.memory_space<vmem>>, vector<1x2x32xf32>
    %98 = vector.shape_cast %97 : vector<1x2x32xf32> to vector<2x32xf32>
    %99 = vector.shape_cast %90 : vector<2x32xf32> to vector<1x2x32xf32>
    tpu.vector_store %arg10[%96, %c0_50, %c0_51], %99 {strides = array<i32>} : memref<4x2x32xf32, #tpu.memory_space<vmem>>, vector<1x2x32xf32>,
    %100 = arith.index_cast %c2_i32 : i32 to index
    %c0_52 = arith.constant 0 : index
    %c0_53 = arith.constant 0 : index
    %101 = vector.load %arg12[%100, %c0_52, %c0_53] : memref<4x2x32xf32, #tpu.memory_space<vmem>>, vector<1x2x32xf32>
    %102 = vector.shape_cast %101 : vector<1x2x32xf32> to vector<2x32xf32>
    %103 = vector.shape_cast %95 : vector<2x32xf32> to vector<1x2x32xf32>
    tpu.vector_store %arg12[%100, %c0_52, %c0_53], %103 {strides = array<i32>} : memref<4x2x32xf32, #tpu.memory_space<vmem>>, vector<1x2x32xf32>,
    %c3_i32 = arith.constant 3 : i32
    %cst_54 = arith.constant dense<0.000000e+00> : vector<2x32xf32>
    %104 = tpu.matmul %95, %15, %cst_54 {dimension_numbers = #tpu.dot_dimension_numbers<[1], [0], [0], [1], [0, 0, 1, 1], [], []>} : vector<2x32xf32>, vector<32x32xf32>, vector<2x32xf32> -> vector<2x32xf32>
    %cst_55 = arith.constant 0.000000e+00 : f32
    %105 = vector.broadcast %cst_55 : f32 to vector<2x32xf32>
    %106 = arith.maximumf %104, %105 : vector<2x32xf32>
    %107 = vector.broadcast %16 : vector<1x32xf32> to vector<2x32xf32>
    %108 = arith.mulf %106, %107 : vector<2x32xf32>
    %cst_56 = arith.constant 0.899999976 : f32
    %109 = vector.broadcast %cst_56 : f32 to vector<2x32xf32>
    %110 = arith.mulf %109, %90 : vector<2x32xf32>
    %cst_57 = arith.constant 1.000000e-01 : f32
    %111 = vector.broadcast %cst_57 : f32 to vector<2x32xf32>
    %112 = arith.mulf %111, %108 : vector<2x32xf32>
    %113 = arith.addf %110, %112 : vector<2x32xf32>
    %114 = arith.index_cast %c3_i32 : i32 to index
    %c0_58 = arith.constant 0 : index
    %c0_59 = arith.constant 0 : index
    %115 = vector.load %arg12[%114, %c0_58, %c0_59] : memref<4x2x32xf32, #tpu.memory_space<vmem>>, vector<1x2x32xf32>
    %116 = vector.shape_cast %115 : vector<1x2x32xf32> to vector<2x32xf32>
    %117 = arith.addf %113, %116 : vector<2x32xf32>
    %118 = arith.negf %117 : vector<2x32xf32>
    %119 = math.exp %118 : vector<2x32xf32>
    %cst_60 = arith.constant 1.000000e+00 : f32
    %120 = vector.broadcast %cst_60 : f32 to vector<2x32xf32>
    %121 = arith.addf %120, %119 : vector<2x32xf32>
    %122 = arith.divf %120, %121 : vector<2x32xf32>
    %123 = arith.index_cast %c3_i32 : i32 to index
    %c0_61 = arith.constant 0 : index
    %c0_62 = arith.constant 0 : index
    %124 = vector.load %arg10[%123, %c0_61, %c0_62] : memref<4x2x32xf32, #tpu.memory_space<vmem>>, vector<1x2x32xf32>
    %125 = vector.shape_cast %124 : vector<1x2x32xf32> to vector<2x32xf32>
    %126 = vector.shape_cast %117 : vector<2x32xf32> to vector<1x2x32xf32>
    tpu.vector_store %arg10[%123, %c0_61, %c0_62], %126 {strides = array<i32>} : memref<4x2x32xf32, #tpu.memory_space<vmem>>, vector<1x2x32xf32>,
    %127 = arith.index_cast %c3_i32 : i32 to index
    %c0_63 = arith.constant 0 : index
    %c0_64 = arith.constant 0 : index
    %128 = vector.load %arg12[%127, %c0_63, %c0_64] : memref<4x2x32xf32, #tpu.memory_space<vmem>>, vector<1x2x32xf32>
    %129 = vector.shape_cast %128 : vector<1x2x32xf32> to vector<2x32xf32>
    %130 = vector.shape_cast %122 : vector<2x32xf32> to vector<1x2x32xf32>
    tpu.vector_store %arg12[%127, %c0_63, %c0_64], %130 {strides = array<i32>} : memref<4x2x32xf32, #tpu.memory_space<vmem>>, vector<1x2x32xf32>,
    %c4_i32 = arith.constant 4 : i32
    %c0_65 = arith.constant 0 : index
    %c0_66 = arith.constant 0 : index
    %131 = vector.load %arg11[%c0_65, %c0_66] : memref<2x32xf32, #tpu.memory_space<vmem>>, vector<2x32xf32>
    tpu.vector_store %arg11[%c0_65, %c0_66], %117 {strides = array<i32>} : memref<2x32xf32, #tpu.memory_space<vmem>>, vector<2x32xf32>,
    %c0_67 = arith.constant 0 : index
    %c0_68 = arith.constant 0 : index
    %c0_69 = arith.constant 0 : index
    %132 = vector.load %arg12[%c0_67, %c0_68, %c0_69] : memref<4x2x32xf32, #tpu.memory_space<vmem>>, vector<4x2x32xf32>
    %133 = vector.shape_cast %132 : vector<4x2x32xf32> to vector<8x32xf32>
    %c0_70 = arith.constant 0 : index
    %c0_71 = arith.constant 0 : index
    %134 = vector.load %arg7[%c0_70, %c0_71] : memref<32x4xf32, #tpu.memory_space<vmem>>, vector<32x4xf32>
    %cst_72 = arith.constant dense<0.000000e+00> : vector<8x4xf32>
    %135 = tpu.matmul %133, %134, %cst_72 {dimension_numbers = #tpu.dot_dimension_numbers<[1], [0], [0], [1], [0, 0, 1, 1], [], []>} : vector<8x32xf32>, vector<32x4xf32>, vector<8x4xf32> -> vector<8x4xf32>
    %c0_73 = arith.constant 0 : index
    %c0_74 = arith.constant 0 : index
    %136 = vector.load %arg8[%c0_73, %c0_74] : memref<1x4xf32, #tpu.memory_space<vmem>>, vector<1x4xf32>
    %137 = vector.broadcast %136 : vector<1x4xf32> to vector<8x4xf32>
    %138 = arith.addf %135, %137 : vector<8x4xf32>
    %cst_75 = arith.constant dense<0xFF800000> : vector<8xf32>
    %139 = vector.multi_reduction <maximumf>, %138, %cst_75 [1] : vector<8x4xf32> to vector<8xf32>
    %140 = vector.shape_cast %139 : vector<8xf32> to vector<8x1xf32>
    %141 = vector.broadcast %140 : vector<8x1xf32> to vector<8x4xf32>
    %142 = arith.subf %138, %141 : vector<8x4xf32>
    %143 = math.exp %142 : vector<8x4xf32>
    %cst_76 = arith.constant dense<0.000000e+00> : vector<8xf32>
    %144 = vector.multi_reduction <add>, %143, %cst_76 [1] : vector<8x4xf32> to vector<8xf32>
    %145 = vector.shape_cast %144 : vector<8xf32> to vector<8x1xf32>
    %146 = tpu.reciprocal %145 {approx = true} : vector<8x1xf32> -> vector<8x1xf32>
    %147 = vector.broadcast %146 : vector<8x1xf32> to vector<8x4xf32>
    %148 = arith.mulf %143, %147 : vector<8x4xf32>
    %149 = vector.shape_cast %148 : vector<8x4xf32> to vector<4x2x4xf32>
    %c0_77 = arith.constant 0 : index
    %c0_78 = arith.constant 0 : index
    %c0_79 = arith.constant 0 : index
    %150 = vector.load %arg9[%c0_77, %c0_78, %c0_79] : memref<4x2x4xf32, #tpu.memory_space<vmem>>, vector<4x2x4xf32>
    tpu.vector_store %arg9[%c0_77, %c0_78, %c0_79], %149 {strides = array<i32>} : memref<4x2x4xf32, #tpu.memory_space<vmem>>, vector<4x2x4xf32>,
    return
  }
  func.func @transform_0(%arg0: i32) -> (i32, i32, i32) {
    %c0_i32 = arith.constant 0 : i32
    %c0_i32_0 = arith.constant 0 : i32
    %c0_i32_1 = arith.constant 0 : i32
    return %arg0, %c0_i32, %c0_i32_0 : i32, i32, i32
  }
  func.func @transform_1(%arg0: i32) -> (i32, i32, i32) {
    %c0_i32 = arith.constant 0 : i32
    %c0_i32_0 = arith.constant 0 : i32
    %c0_i32_1 = arith.constant 0 : i32
    return %arg0, %c0_i32, %c0_i32_0 : i32, i32, i32
  }
  func.func @transform_2(%arg0: i32) -> (i32, i32) {
    %c0_i32 = arith.constant 0 : i32
    %c0_i32_0 = arith.constant 0 : i32
    %c0_i32_1 = arith.constant 0 : i32
    return %c0_i32, %c0_i32_0 : i32, i32
  }
  func.func @transform_3(%arg0: i32) -> (i32, i32) {
    %c0_i32 = arith.constant 0 : i32
    %c0_i32_0 = arith.constant 0 : i32
    %c0_i32_1 = arith.constant 0 : i32
    return %c0_i32, %c0_i32_0 : i32, i32
  }
  func.func @transform_4(%arg0: i32) -> (i32, i32) {
    %c0_i32 = arith.constant 0 : i32
    %c0_i32_0 = arith.constant 0 : i32
    %c0_i32_1 = arith.constant 0 : i32
    return %c0_i32, %c0_i32_0 : i32, i32
  }
  func.func @transform_5(%arg0: i32) -> (i32, i32) {
    %c0_i32 = arith.constant 0 : i32
    %c0_i32_0 = arith.constant 0 : i32
    %c0_i32_1 = arith.constant 0 : i32
    return %c0_i32, %c0_i32_0 : i32, i32
  }
  func.func @transform_6(%arg0: i32) -> (i32, i32) {
    %c0_i32 = arith.constant 0 : i32
    %c0_i32_0 = arith.constant 0 : i32
    %c0_i32_1 = arith.constant 0 : i32
    return %c0_i32, %c0_i32_0 : i32, i32
  }
  func.func @transform_7(%arg0: i32) -> (i32, i32) {
    %c0_i32 = arith.constant 0 : i32
    %c0_i32_0 = arith.constant 0 : i32
    %c0_i32_1 = arith.constant 0 : i32
    return %c0_i32, %c0_i32_0 : i32, i32
  }
  func.func @transform_8(%arg0: i32) -> (i32, i32, i32) {
    %c0_i32 = arith.constant 0 : i32
    %c0_i32_0 = arith.constant 0 : i32
    %c0_i32_1 = arith.constant 0 : i32
    return %arg0, %c0_i32, %c0_i32_0 : i32, i32, i32
  }
  func.func @transform_9(%arg0: i32) -> (i32, i32, i32) {
    %c0_i32 = arith.constant 0 : i32
    %c0_i32_0 = arith.constant 0 : i32
    %c0_i32_1 = arith.constant 0 : i32
    return %arg0, %c0_i32, %c0_i32_0 : i32, i32, i32
  }
}

</mosaic_0001>

<llo_original>
// kernel: tpu_custom_call.1
$region0: #{tpu_custom_call.1}
  #allocation0 [shape = 'u32[]', space=smem, size = 0x4, offset = 0x4, fixed_abs, tag = 'smem constant byte address 0x4 - core index']
  #allocation1 [shape = 'u32[144,128]{1,0:T(1,128)}', space=vmem, size = 0x12000, scoped, tag = 'internal scratch']
  #allocation2 [shape = 'f32[2,32]{1,0:T(2,128)}', space=vmem, size = 0x400, scoped, tag = 'scratch operand']
  #allocation3 [shape = 'f32[4,2,32]{2,1,0:T(2,128)}', space=vmem, size = 0x1000, scoped, tag = 'scratch operand']
  %s0 = inlined_call_operand.vmem [shape: f32[8,2,4], index: 0, kind: input, shape index: {}]
  %s1 = inlined_call_operand.vmem [shape: f32[8,2,32], index: 1, kind: input, shape index: {}]
  %s2 = inlined_call_operand.vmem [shape: f32[2,32], index: 2, kind: input, shape index: {}]
  %s3 = inlined_call_operand.vmem [shape: f32[4,32], index: 3, kind: input, shape index: {}]
  %s4 = inlined_call_operand.vmem [shape: f32[32,32], index: 4, kind: input, shape index: {}]
  %s5 = inlined_call_operand.vmem [shape: f32[1,32], index: 5, kind: input, shape index: {}]
  %s6 = inlined_call_operand.vmem [shape: f32[32,4], index: 6, kind: input, shape index: {}]
  %s7 = inlined_call_operand.vmem [shape: f32[1,4], index: 7, kind: input, shape index: {}]
  %s8 = inlined_call_operand.vmem [shape: f32[8,2,4], index: 8, kind: output, shape index: {0}]
  %s9 = inlined_call_operand.hbm [shape: f32[8,2,32], index: 9, kind: output, shape index: {1}]
  %10 = xla_tuple %s8, %s9
  %s11 = sld [smem:[#allocation0]]
  $region77: #{tpu_custom_call.1} parent=0
    _
  %s13 = ssub.s32 1, %s11
  %s14 = scalar_select 0, %s13, %s11
  $region1: #{tpu_custom_call.1} parent=0
    #allocation4 [shape = 'u8[8192]{0}', space=vmem, size = 0x2000, scoped, tag = 'output window, operand 1']
    #allocation5 [shape = 's32[2]{0}', space=sflag, size = 0x8, scoped, tag = 'scoped memory for tpu_custom_call.1']
    %15 = vsyncpa [#allocation5], 0
    %s16 = scalar_lea.sflag [#allocation5], 1
    %17 = vsyncpa %s16, 0
    loop: start=0, step=1, limit=4
    $region2: #{tpu_custom_call.1} parent=1 // loop_pre_header
      _
    $region3: #{tpu_custom_call.1} parent=1 // loop_header
      %s19 = sphi 0, %s23
      %p20 = scmp.ge.s32.totalorder %s19, 4
      %s29 = sphi 0, %s31
      %s32 = sphi 0, %s29
      %s33 = sphi 0, %s32
      %s49 = sphi 0, %s33
      %s55 = sphi 0, %s57
      %s58 = sphi 0, %s55
      %s59 = sphi 0, %s58
      %s75 = sphi 0, %s59
      %s79 = sphi 0, %s79
      %s81 = sphi 0, %s79
      %s82 = sphi 0, %s81
      %s96 = sphi 0, %s82
      %s100 = sphi 0, %s100
      %s102 = sphi 0, %s100
      %s103 = sphi 0, %s102
      %s117 = sphi 0, %s103
      %s121 = sphi 0, %s121
      %s123 = sphi 0, %s121
      %s124 = sphi 0, %s123
      %s138 = sphi 0, %s124
      %s142 = sphi 0, %s142
      %s144 = sphi 0, %s142
      %s145 = sphi 0, %s144
      %s159 = sphi 0, %s145
      %s163 = sphi 0, %s163
      %s165 = sphi 0, %s163
      %s166 = sphi 0, %s165
      %s180 = sphi 0, %s166
      %s184 = sphi 0, %s184
      %s186 = sphi 0, %s184
      %s187 = sphi 0, %s186
      %s201 = sphi 0, %s187
      %s207 = sphi 0, %s209
      %s210 = sphi 0, %s207
      %s211 = sphi 0, %s210
      %s227 = sphi 0, %s211
      %s233 = sphi 0, %s235
      %s236 = sphi 0, %s233
      %s237 = sphi 0, %s236
      %s253 = sphi 0, %s237
    $region4: #{tpu_custom_call.1} parent=1 // loop_header_branch
      %22 = sbr.rel (%p20) target = $region8
    $region5: #{tpu_custom_call.1} parent=1 // loop_body
      %s24 = ssub.s32 %s19, 1
      %s25 = ssub.s32 %s19, 2
      %s26 = sadd.s32 %s19, 1
      %s27 = ssub.s32 %s19, %s26
      %p28 = scmp.eq.s32.totalorder %s27, 0
      %s30 = sadd.s32 %s29, 1
      %s31 = scalar_select %p28, %s29, %s30
      %p34 = pneg %p28
      %p35 = scmp.eq.s32.totalorder %s19, 1
      %p36 = por %p34, %p35
      %p37 = scmp.ne.s32.totalorder %s29, %s32
      %p38 = scmp.eq.s32.totalorder %s19, 0
      %p39 = por %p37, %p38
      %p40 = scmp.ne.s32.totalorder %s29, %s32
      %p41 = scmp.eq.s32.totalorder %s24, 1
      %p42 = por %p40, %p41
      %p43 = scmp.ne.s32.totalorder %s32, %s33
      %p44 = scmp.eq.s32.totalorder %s24, 0
      %p45 = por %p43, %p44
      %p46 = scmp.ne.s32.totalorder %s32, %s33
      %p47 = scmp.eq.s32.totalorder %s25, 1
      %p48 = por %p46, %p47
      %p50 = scmp.ne.s32.totalorder %s33, %s49
      %p51 = scmp.eq.s32.totalorder %s25, 0
      %p52 = por %p50, %p51
      %s53 = ssub.s32 %s19, %s26
      %p54 = scmp.eq.s32.totalorder %s53, 0
      %s56 = sadd.s32 %s55, 1
      %s57 = scalar_select %p54, %s55, %s56
      %p60 = pneg %p54
      %p61 = scmp.eq.s32.totalorder %s19, 1
      %p62 = por %p60, %p61
      %p63 = scmp.ne.s32.totalorder %s55, %s58
      %p64 = scmp.eq.s32.totalorder %s19, 0
      %p65 = por %p63, %p64
      %p66 = scmp.ne.s32.totalorder %s55, %s58
      %p67 = scmp.eq.s32.totalorder %s24, 1
      %p68 = por %p66, %p67
      %p69 = scmp.ne.s32.totalorder %s58, %s59
      %p70 = scmp.eq.s32.totalorder %s24, 0
      %p71 = por %p69, %p70
      %p72 = scmp.ne.s32.totalorder %s58, %s59
      %p73 = scmp.eq.s32.totalorder %s25, 1
      %p74 = por %p72, %p73
      %p76 = scmp.ne.s32.totalorder %s59, %s75
      %p77 = scmp.eq.s32.totalorder %s25, 0
      %p78 = por %p76, %p77
      %s80 = sadd.s32 %s79, 1
      %p83 = scmp.eq.s32.totalorder %s19, 1
      %p84 = scmp.ne.s32.totalorder %s79, %s81
      %p85 = scmp.eq.s32.totalorder %s19, 0
      %p86 = por %p84, %p85
      %p87 = scmp.ne.s32.totalorder %s79, %s81
      %p88 = scmp.eq.s32.totalorder %s24, 1
      %p89 = por %p87, %p88
      %p90 = scmp.ne.s32.totalorder %s81, %s82
      %p91 = scmp.eq.s32.totalorder %s24, 0
      %p92 = por %p90, %p91
      %p93 = scmp.ne.s32.totalorder %s81, %s82
      %p94 = scmp.eq.s32.totalorder %s25, 1
      %p95 = por %p93, %p94
      %p97 = scmp.ne.s32.totalorder %s82, %s96
      %p98 = scmp.eq.s32.totalorder %s25, 0
      %p99 = por %p97, %p98
      %s101 = sadd.s32 %s100, 1
      %p104 = scmp.eq.s32.totalorder %s19, 1
      %p105 = scmp.ne.s32.totalorder %s100, %s102
      %p106 = scmp.eq.s32.totalorder %s19, 0
      %p107 = por %p105, %p106
      %p108 = scmp.ne.s32.totalorder %s100, %s102
      %p109 = scmp.eq.s32.totalorder %s24, 1
      %p110 = por %p108, %p109
      %p111 = scmp.ne.s32.totalorder %s102, %s103
      %p112 = scmp.eq.s32.totalorder %s24, 0
      %p113 = por %p111, %p112
      %p114 = scmp.ne.s32.totalorder %s102, %s103
      %p115 = scmp.eq.s32.totalorder %s25, 1
      %p116 = por %p114, %p115
      %p118 = scmp.ne.s32.totalorder %s103, %s117
      %p119 = scmp.eq.s32.totalorder %s25, 0
      %p120 = por %p118, %p119
      %s122 = sadd.s32 %s121, 1
      %p125 = scmp.eq.s32.totalorder %s19, 1
      %p126 = scmp.ne.s32.totalorder %s121, %s123
      %p127 = scmp.eq.s32.totalorder %s19, 0
      %p128 = por %p126, %p127
      %p129 = scmp.ne.s32.totalorder %s121, %s123
      %p130 = scmp.eq.s32.totalorder %s24, 1
      %p131 = por %p129, %p130
      %p132 = scmp.ne.s32.totalorder %s123, %s124
      %p133 = scmp.eq.s32.totalorder %s24, 0
      %p134 = por %p132, %p133
      %p135 = scmp.ne.s32.totalorder %s123, %s124
      %p136 = scmp.eq.s32.totalorder %s25, 1
      %p137 = por %p135, %p136
      %p139 = scmp.ne.s32.totalorder %s124, %s138
      %p140 = scmp.eq.s32.totalorder %s25, 0
      %p141 = por %p139, %p140
      %s143 = sadd.s32 %s142, 1
      %p146 = scmp.eq.s32.totalorder %s19, 1
      %p147 = scmp.ne.s32.totalorder %s142, %s144
      %p148 = scmp.eq.s32.totalorder %s19, 0
      %p149 = por %p147, %p148
      %p150 = scmp.ne.s32.totalorder %s142, %s144
      %p151 = scmp.eq.s32.totalorder %s24, 1
      %p152 = por %p150, %p151
      %p153 = scmp.ne.s32.totalorder %s144, %s145
      %p154 = scmp.eq.s32.totalorder %s24, 0
      %p155 = por %p153, %p154
      %p156 = scmp.ne.s32.totalorder %s144, %s145
      %p157 = scmp.eq.s32.totalorder %s25, 1
      %p158 = por %p156, %p157
      %p160 = scmp.ne.s32.totalorder %s145, %s159
      %p161 = scmp.eq.s32.totalorder %s25, 0
      %p162 = por %p160, %p161
      %s164 = sadd.s32 %s163, 1
      %p167 = scmp.eq.s32.totalorder %s19, 1
      %p168 = scmp.ne.s32.totalorder %s163, %s165
      %p169 = scmp.eq.s32.totalorder %s19, 0
      %p170 = por %p168, %p169
      %p171 = scmp.ne.s32.totalorder %s163, %s165
      %p172 = scmp.eq.s32.totalorder %s24, 1
      %p173 = por %p171, %p172
      %p174 = scmp.ne.s32.totalorder %s165, %s166
      %p175 = scmp.eq.s32.totalorder %s24, 0
      %p176 = por %p174, %p175
      %p177 = scmp.ne.s32.totalorder %s165, %s166
      %p178 = scmp.eq.s32.totalorder %s25, 1
      %p179 = por %p177, %p178
      %p181 = scmp.ne.s32.totalorder %s166, %s180
      %p182 = scmp.eq.s32.totalorder %s25, 0
      %p183 = por %p181, %p182
      %s185 = sadd.s32 %s184, 1
      %p188 = scmp.eq.s32.totalorder %s19, 1
      %p189 = scmp.ne.s32.totalorder %s184, %s186
      %p190 = scmp.eq.s32.totalorder %s19, 0
      %p191 = por %p189, %p190
      %p192 = scmp.ne.s32.totalorder %s184, %s186
      %p193 = scmp.eq.s32.totalorder %s24, 1
      %p194 = por %p192, %p193
      %p195 = scmp.ne.s32.totalorder %s186, %s187
      %p196 = scmp.eq.s32.totalorder %s24, 0
      %p197 = por %p195, %p196
      %p198 = scmp.ne.s32.totalorder %s186, %s187
      %p199 = scmp.eq.s32.totalorder %s25, 1
      %p200 = por %p198, %p199
      %p202 = scmp.ne.s32.totalorder %s187, %s201
      %p203 = scmp.eq.s32.totalorder %s25, 0
      %p204 = por %p202, %p203
      %s205 = ssub.s32 %s19, %s26
      %p206 = scmp.eq.s32.totalorder %s205, 0
      %s208 = sadd.s32 %s207, 1
      %s209 = scalar_select %p206, %s207, %s208
      %p212 = pneg %p206
      %p213 = scmp.eq.s32.totalorder %s19, 1
      %p214 = por %p212, %p213
      %p215 = scmp.ne.s32.totalorder %s207, %s210
      %p216 = scmp.eq.s32.totalorder %s19, 0
      %p217 = por %p215, %p216
      %p218 = scmp.ne.s32.totalorder %s207, %s210
      %p219 = scmp.eq.s32.totalorder %s24, 1
      %p220 = por %p218, %p219
      %p221 = scmp.ne.s32.totalorder %s210, %s211
      %p222 = scmp.eq.s32.totalorder %s24, 0
      %p223 = por %p221, %p222
      %p224 = scmp.ne.s32.totalorder %s210, %s211
      %p225 = scmp.eq.s32.totalorder %s25, 1
      %p226 = por %p224, %p225
      %p228 = scmp.ne.s32.totalorder %s211, %s227
      %p229 = scmp.eq.s32.totalorder %s25, 0
      %p230 = por %p228, %p229
      %s231 = ssub.s32 %s19, %s26
      %p232 = scmp.eq.s32.totalorder %s231, 0
      %s234 = sadd.s32 %s233, 1
      %s235 = scalar_select %p232, %s233, %s234
      %p238 = pneg %p232
      %p239 = scmp.eq.s32.totalorder %s19, 1
      %p240 = por %p238, %p239
      %p241 = scmp.ne.s32.totalorder %s233, %s236
      %p242 = scmp.eq.s32.totalorder %s19, 0
      %p243 = por %p241, %p242
      %p244 = scmp.ne.s32.totalorder %s233, %s236
      %p245 = scmp.eq.s32.totalorder %s24, 1
      %p246 = por %p244, %p245
      %p247 = scmp.ne.s32.totalorder %s236, %s237
      %p248 = scmp.eq.s32.totalorder %s24, 0
      %p249 = por %p247, %p248
      %p250 = scmp.ne.s32.totalorder %s236, %s237
      %p251 = scmp.eq.s32.totalorder %s25, 1
      %p252 = por %p250, %p251
      %p254 = scmp.ne.s32.totalorder %s237, %s253
      %p255 = scmp.eq.s32.totalorder %s25, 0
      %p256 = por %p254, %p255
      %p257 = scmp.le.s32.totalorder 1, %s19
      %p258 = scmp.lt.s32.totalorder %s19, 3
      %p259 = pnand %p257, %p258
      %p260 = pneg %p259
      // Predicated region
      $region9: #{tpu_custom_call.1} parent=5 // pred_check
        _
      $region10: #{tpu_custom_call.1} parent=5 // pred_check_branch
        %262 = sbr.rel (%p259) target = $region12
      $region11: #{tpu_custom_call.1} parent=5 // pred_region
        %s263 = ssub.s32 %s19, 1
        // Predicated region
        $region13: #{tpu_custom_call.1} parent=11 // pred_check
          %p264 = pneg %p92
        $region14: #{tpu_custom_call.1} parent=11 // pred_check_branch
          %266 = sbr.rel (%p264) target = $region16
        $region15: #{tpu_custom_call.1} parent=11 // pred_region
          _
        $region16: #{tpu_custom_call.1} parent=11 // pred_fallthru
          _
        // Predicated region
        $region17: #{tpu_custom_call.1} parent=11 // pred_check
          %p267 = pneg %p113
        $region18: #{tpu_custom_call.1} parent=11 // pred_check_branch
          %269 = sbr.rel (%p267) target = $region20
        $region19: #{tpu_custom_call.1} parent=11 // pred_region
          _
        $region20: #{tpu_custom_call.1} parent=11 // pred_fallthru
          _
        // Predicated region
        $region21: #{tpu_custom_call.1} parent=11 // pred_check
          %p270 = pneg %p134
        $region22: #{tpu_custom_call.1} parent=11 // pred_check_branch
          %272 = sbr.rel (%p270) target = $region24
        $region23: #{tpu_custom_call.1} parent=11 // pred_region
          _
        $region24: #{tpu_custom_call.1} parent=11 // pred_fallthru
          _
        // Predicated region
        $region25: #{tpu_custom_call.1} parent=11 // pred_check
          %p273 = pneg %p155
        $region26: #{tpu_custom_call.1} parent=11 // pred_check_branch
          %275 = sbr.rel (%p273) target = $region28
        $region27: #{tpu_custom_call.1} parent=11 // pred_region
          _
        $region28: #{tpu_custom_call.1} parent=11 // pred_fallthru
          _
        // Predicated region
        $region29: #{tpu_custom_call.1} parent=11 // pred_check
          %p276 = pneg %p176
        $region30: #{tpu_custom_call.1} parent=11 // pred_check_branch
          %278 = sbr.rel (%p276) target = $region32
        $region31: #{tpu_custom_call.1} parent=11 // pred_region
          _
        $region32: #{tpu_custom_call.1} parent=11 // pred_fallthru
          _
        // Predicated region
        $region33: #{tpu_custom_call.1} parent=11 // pred_check
          %p279 = pneg %p197
        $region34: #{tpu_custom_call.1} parent=11 // pred_check_branch
          %281 = sbr.rel (%p279) target = $region36
        $region35: #{tpu_custom_call.1} parent=11 // pred_region
          _
        $region36: #{tpu_custom_call.1} parent=11 // pred_fallthru
          _
      $region12: #{tpu_custom_call.1} parent=5 // pred_fallthru
        _
      %p282 = scmp.lt.s32.totalorder %s19, 2
      // Predicated region
      $region37: #{tpu_custom_call.1} parent=5 // pred_check
        %p283 = pneg %p282
      $region38: #{tpu_custom_call.1} parent=5 // pred_check_branch
        %285 = sbr.rel (%p283) target = $region40
      $region39: #{tpu_custom_call.1} parent=5 // pred_region
        // Predicated region
        $region41: #{tpu_custom_call.1} parent=39 // pred_check
          %p286 = pneg %p39
        $region42: #{tpu_custom_call.1} parent=39 // pred_check_branch
          %288 = sbr.rel (%p286) target = $region44
        $region43: #{tpu_custom_call.1} parent=39 // pred_region
          %s289 = smul.u32 4, %s19
          %p290 = scmp.lt.s32.totalorder %s289, 7
          %s291 = scalar_select %p290, %s289, 7
          %s292 = smul.addr %s291, 2
          %s293 = scalar_lea.vmem %s0, %s292
          %s294 = smul.u32 4, %s19
        $region44: #{tpu_custom_call.1} parent=39 // pred_fallthru
          _
        // Predicated region
        $region45: #{tpu_custom_call.1} parent=39 // pred_check
          %p295 = pneg %p65
        $region46: #{tpu_custom_call.1} parent=39 // pred_check_branch
          %297 = sbr.rel (%p295) target = $region48
        $region47: #{tpu_custom_call.1} parent=39 // pred_region
          %s298 = smul.u32 4, %s19
          %p299 = scmp.lt.s32.totalorder %s298, 7
          %s300 = scalar_select %p299, %s298, 7
          %s301 = smul.addr %s300, 2
          %s302 = scalar_lea.vmem %s1, %s301
          %s303 = smul.u32 4, %s19
        $region48: #{tpu_custom_call.1} parent=39 // pred_fallthru
          _
      $region40: #{tpu_custom_call.1} parent=5 // pred_fallthru
        _
      %p304 = scmp.le.s32.totalorder 1, %s19
      %p305 = scmp.lt.s32.totalorder %s19, 3
      %p306 = pnand %p304, %p305
      %p307 = pneg %p306
      // Predicated region
      $region49: #{tpu_custom_call.1} parent=5 // pred_check
        _
      $region50: #{tpu_custom_call.1} parent=5 // pred_check_branch
        %309 = sbr.rel (%p306) target = $region52
      $region51: #{tpu_custom_call.1} parent=5 // pred_region
        %s310 = ssub.s32 %s19, 1
        %s311 = smul.u32 4, %s24
        %p312 = scmp.lt.s32.totalorder %s311, 7
        %s313 = scalar_select %p312, %s311, 7
        %s314 = smul.addr %s313, 2
        %s315 = scalar_lea.vmem %s0, %s314
        %p316 = pneg %p45
        %p317 = pneg %p42
        %s318 = smul.u32 4, %s24
        %p319 = scmp.lt.s32.totalorder %s318, 7
        %s320 = scalar_select %p319, %s318, 7
        %s321 = smul.addr %s320, 2
        %s322 = scalar_lea.vmem %s1, %s321
        %p323 = pneg %p71
        %p324 = pneg %p68
        %p325 = pneg %p92
        %p326 = pneg %p89
        %p327 = pneg %p113
        %p328 = pneg %p110
        %p329 = pneg %p134
        %p330 = pneg %p131
        %p331 = pneg %p155
        %p332 = pneg %p152
        %p333 = pneg %p176
        %p334 = pneg %p173
        %p335 = pneg %p197
        %p336 = pneg %p194
        %p337 = pneg %p223
        %p338 = pneg %p220
        %s339 = smul.u32 4, %s24
        %p340 = scmp.lt.s32.totalorder %s339, 7
        %s341 = scalar_select %p340, %s339, 7
        %s342 = smul.addr %s341, 2
        %s343 = scalar_lea.vmem %s8, %s342
        %p344 = pneg %p249
        %p345 = pneg %p246
        %s346 = sand.u32 %s236, 1
        %s347 = scalar_lea.sflag [#allocation5], %s346
        %s348 = sand.u32 %s236, 1
        %s349 = smul.addr %s348, 8
        %s350 = scalar_lea.vmem [#allocation4], %s349
        %s351 = smul.u32 4, %s24
        %p352 = scmp.lt.s32.totalorder %s351, 7
        %s353 = scalar_select %p352, %s351, 7
        %s354 = smul.addr %s353, 2
        %s355 = scalar_lea.vmem %s0, %s354
        %s356 = smul.u32 4, %s24
        %s357 = smul.u32 4, %s24
        %p358 = scmp.lt.s32.totalorder %s357, 7
        %s359 = scalar_select %p358, %s357, 7
        %s360 = smul.addr %s359, 2
        %s361 = scalar_lea.vmem %s1, %s360
        %s362 = smul.u32 4, %s24
        %s363 = smul.u32 4, %s24
        %p364 = scmp.lt.s32.totalorder %s363, 7
        %s365 = scalar_select %p364, %s363, 7
        %s366 = smul.addr %s365, 2
        %s367 = scalar_lea.vmem %s8, %s366
        %s368 = smul.u32 4, %s24
        %s369 = smul.u32 4, %s24
        %p370 = scmp.eq.s32.totalorder %s24, 0
        // Predicated region
        $region53: #{tpu_custom_call.1} parent=51 // pred_check
          %p371 = pneg %p370
        $region54: #{tpu_custom_call.1} parent=51 // pred_check_branch
          %373 = sbr.rel (%p371) target = $region56
        $region55: #{tpu_custom_call.1} parent=51 // pred_region
          %v374 = vld [vmem:[%s2] sm:$0x3]
          %vm375 = vcmask 254976
          %376 = vst.msk [vmem:[#allocation2] sm:$0x3] %vm375, %v374
        $region56: #{tpu_custom_call.1} parent=51 // pred_fallthru
          _
        %v377 = vld [vmem:[%s355] sm:$0x3]
        %v378 = vld [vmem:[%s355 + $0x2] sm:$0x3]
        %v379 = vld [vmem:[%s355 + $0x4] sm:$0x3]
        %v380 = vld [vmem:[%s355 + $0x6] sm:$0x3]
        %v381 = vld [vmem:[%s3] sm:$0xf]
        %v386 = vcombine.low %v377, %v378
        %v387 = vcombine.low %v379, %v380
        %v389 = vunpack.c.l.s4 1983009808
        %v390 = vunpack.c.0.s8 %v389
        %v391 = vlaneseq
        %v392 = vshrl.u32 %v391, 7
        %v393 = vsub.s32 %v390, %v392
        %v394 = vrot.slane %v386, %v393
        %v396 = vunpack.c.l.s4 1983009808
        %v397 = vunpack.c.0.s8 %v396
        %v398 = vlaneseq
        %v399 = vshrl.u32 %v398, 7
        %v400 = vsub.s32 %v397, %v399
        %v401 = vrot.slane %v387, %v400
        %v402 = vcombine.low %v394, %v401
        %vm403 = vcmask 31744
        %v404 = vsel %vm403, %v402, 0
        %vm406 = vcmask 1043456
        %v408 = vsel %vm406, %v381, 0
        %410 = vmatprep.subr.mxu0 0.0
        %411 = vmatpush1.msra.mxu0 %v408
        %412 = vmatprep.subr.mxu0 0.0
        %413 = vmatpush1.msra.mxu0 0.0
        %414 = vmatprep.subr.mxu0 0.0
        %415 = vmatpush1.msra.mxu0 0.0
        %416 = vmatprep.subr.mxu0 0.0
        %417 = vmatpush1.msra.mxu0 0.0
        %418 = vmatprep.subr.mxu0 0.0
        %419 = vmatpush1.msra.mxu0 0.0
        %420 = vmatprep.subr.mxu0 0.0
        %421 = vmatpush1.msra.mxu0 0.0
        %422 = vmatprep.subr.mxu0 0.0
        %423 = vmatpush1.msra.mxu0 0.0
        %424 = vmatprep.subr.mxu0 0.0
        %425 = vmatpush1.msra.mxu0 0.0
        %426 = vmatprep.subr.mxu0 0.0
        %427 = vmatpush1.msra.mxu0 0.0
        %428 = vmatprep.subr.mxu0 0.0
        %429 = vmatpush1.msra.mxu0 0.0
        %430 = vmatprep.subr.mxu0 0.0
        %431 = vmatpush1.msra.mxu0 0.0
        %432 = vmatprep.subr.mxu0 0.0
        %433 = vmatpush1.msra.mxu0 0.0
        %434 = vmatprep.subr.mxu0 0.0
        %435 = vmatpush1.msra.mxu0 0.0
        %436 = vmatprep.subr.mxu0 0.0
        %437 = vmatpush1.msra.mxu0 0.0
        %438 = vmatprep.subr.mxu0 0.0
        %439 = vmatpush1.msra.mxu0 0.0
        %440 = vmatprep.subr.mxu0 0.0
        %441 = vmatpush1.msra.mxu0 0.0
        %442 = vmatprep.subr.mxu0 0.0
        %443 = vmatpush1.msra.mxu0 0.0
        %444 = vmatprep.subr.mxu0 0.0
        %445 = vmatpush1.msra.mxu0 0.0
        %446 = vmatprep.subr.mxu0 0.0
        %447 = vmatpush1.msra.mxu0 0.0
        %448 = vmatprep.subr.mxu0 0.0
        %449 = vmatpush1.msra.mxu0 0.0
        %450 = vmatprep.subr.mxu0 0.0
        %451 = vmatpush1.msra.mxu0 0.0
        %452 = vmatprep.subr.mxu0 0.0
        %453 = vmatpush1.msra.mxu0 0.0
        %454 = vmatprep.subr.mxu0 0.0
        %455 = vmatpush1.msra.mxu0 0.0
        %456 = vmatprep.subr.mxu0 0.0
        %457 = vmatpush1.msra.mxu0 0.0
        %458 = vmatprep.subr.mxu0 0.0
        %459 = vmatpush1.msra.mxu0 0.0
        %460 = vmatprep.subr.mxu0 0.0
        %461 = vmatpush1.msra.mxu0 0.0
        %462 = vmatprep.subr.mxu0 0.0
        %463 = vmatpush1.msra.mxu0 0.0
        %464 = vmatprep.subr.mxu0 0.0
        %465 = vmatpush1.msra.mxu0 0.0
        %466 = vmatprep.subr.mxu0 0.0
        %467 = vmatpush1.msra.mxu0 0.0
        %468 = vmatprep.subr.mxu0 0.0
        %469 = vmatpush1.msra.mxu0 0.0
        %470 = vmatprep.subr.mxu0 0.0
        %471 = vmatpush1.msra.mxu0 0.0
        %472 = vmatprep.subr.mxu0 0.0
        %473 = vmatpush1.msra.mxu0 0.0
        %474 = vmatprep.mubr.f32.mxu0 0.0
        %475 = vmatmul.mubr.f32.gmra.mrb[0].mxu0 %v404
        %v476 = vpop.f32.mrb[0].mxu0
        %v477 = vadd.f32 0.0, %v476
        %v478 = vpop.f32.mrb[0].mxu0
        %479 = vdwg.mxu0
        %v481 = vcombine.high %v477, %v477
        %v483 = vunpack.c.l.s4 1983009808
        %v484 = vunpack.c.0.s8 %v483
        %v485 = vlaneseq
        %v486 = vshrl.u32 %v485, 7
        %v487 = vsub.s32 %v484, %v486
        %v488 = vrot.slane %v477, %v487
        %v490 = vunpack.c.l.s4 1983009808
        %v491 = vunpack.c.0.s8 %v490
        %v492 = vlaneseq
        %v493 = vshrl.u32 %v492, 7
        %v494 = vsub.s32 %v491, %v493
        %v495 = vrot.slane %v481, %v494
        %v496 = vcombine.high %v488, %v488
        %v497 = vcombine.high %v495, %v495
        %v502 = vmul.f32 %v488, 0.1
        %v503 = vmul.f32 %v496, 0.1
        %v504 = vmul.f32 %v495, 0.1
        %v505 = vmul.f32 %v497, 0.1
        %v506 = vld [vmem:[%s361] sm:$0x3]
        %v507 = vld [vmem:[%s361 + $0x2] sm:$0x3]
        %v508 = vld [vmem:[%s361 + $0x4] sm:$0x3]
        %v509 = vld [vmem:[%s361 + $0x6] sm:$0x3]
        %v510 = vmul.f32 %v506, 0.01
        %v511 = vmul.f32 %v507, 0.01
        %v512 = vmul.f32 %v508, 0.01
        %v513 = vmul.f32 %v509, 0.01
        %v514 = vadd.f32 %v502, %v510
        %v515 = vadd.f32 %v503, %v511
        %v516 = vadd.f32 %v504, %v512
        %v517 = vadd.f32 %v505, %v513
        %vm518 = vcmask 254976
        %519 = vst.msk [vmem:[#allocation3] sm:$0x3] %vm518, %v514
        %520 = vst.msk [vmem:[#allocation3 + $0x2] sm:$0x3] %vm518, %v515
        %521 = vst.msk [vmem:[#allocation3 + $0x4] sm:$0x3] %vm518, %v516
        %522 = vst.msk [vmem:[#allocation3 + $0x6] sm:$0x3] %vm518, %v517
        %v523 = vld [vmem:[%s4] sm:$0xff]
        %v524 = vld [vmem:[%s4 + $0x8] sm:$0xff]
        %v525 = vld [vmem:[%s4 + $0x10] sm:$0xff]
        %v526 = vld [vmem:[%s4 + $0x18] sm:$0xff]
        %v527 = vld [vmem:[%s5] sm:$0x1]
        %v528 = vld [vmem:[#allocation2] sm:$0x3]
        %v529 = vxor.u32 %v528, 2147483648
        %v530 = vmul.f32 %v529, 1.442695
        %v531 = vpow.pop %v530
        %v532 = vadd.f32 %v531, 1.0
        %v533 = vrcp.pop %v532
        %v534 = vmul.f32 1.0, %v533
        %vm535 = vcmask 261120
        %v537 = vsel %vm535, %v534, 0
        %539 = vmatprep.subr.mxu0 0.0
        %540 = vmatpush1.msra.mxu0 %v523
        %541 = vmatprep.subr.mxu0 0.0
        %542 = vmatpush1.msra.mxu0 %v524
        %543 = vmatprep.subr.mxu0 0.0
        %544 = vmatpush1.msra.mxu0 %v525
        %545 = vmatprep.subr.mxu0 0.0
        %546 = vmatpush1.msra.mxu0 %v526
        %547 = vmatprep.subr.mxu0 0.0
        %548 = vmatpush1.msra.mxu0 0.0
        %549 = vmatprep.subr.mxu0 0.0
        %550 = vmatpush1.msra.mxu0 0.0
        %551 = vmatprep.subr.mxu0 0.0
        %552 = vmatpush1.msra.mxu0 0.0
        %553 = vmatprep.subr.mxu0 0.0
        %554 = vmatpush1.msra.mxu0 0.0
        %555 = vmatprep.subr.mxu0 0.0
        %556 = vmatpush1.msra.mxu0 0.0
        %557 = vmatprep.subr.mxu0 0.0
        %558 = vmatpush1.msra.mxu0 0.0
        %559 = vmatprep.subr.mxu0 0.0
        %560 = vmatpush1.msra.mxu0 0.0
        %561 = vmatprep.subr.mxu0 0.0
        %562 = vmatpush1.msra.mxu0 0.0
        %563 = vmatprep.subr.mxu0 0.0
        %564 = vmatpush1.msra.mxu0 0.0
        %565 = vmatprep.subr.mxu0 0.0
        %566 = vmatpush1.msra.mxu0 0.0
        %567 = vmatprep.subr.mxu0 0.0
        %568 = vmatpush1.msra.mxu0 0.0
        %569 = vmatprep.subr.mxu0 0.0
        %570 = vmatpush1.msra.mxu0 0.0
        %571 = vmatprep.subr.mxu0 0.0
        %572 = vmatpush1.msra.mxu0 0.0
        %573 = vmatprep.subr.mxu0 0.0
        %574 = vmatpush1.msra.mxu0 0.0
        %575 = vmatprep.subr.mxu0 0.0
        %576 = vmatpush1.msra.mxu0 0.0
        %577 = vmatprep.subr.mxu0 0.0
        %578 = vmatpush1.msra.mxu0 0.0
        %579 = vmatprep.subr.mxu0 0.0
        %580 = vmatpush1.msra.mxu0 0.0
        %581 = vmatprep.subr.mxu0 0.0
        %582 = vmatpush1.msra.mxu0 0.0
        %583 = vmatprep.subr.mxu0 0.0
        %584 = vmatpush1.msra.mxu0 0.0
        %585 = vmatprep.subr.mxu0 0.0
        %586 = vmatpush1.msra.mxu0 0.0
        %587 = vmatprep.subr.mxu0 0.0
        %588 = vmatpush1.msra.mxu0 0.0
        %589 = vmatprep.subr.mxu0 0.0
        %590 = vmatpush1.msra.mxu0 0.0
        %591 = vmatprep.subr.mxu0 0.0
        %592 = vmatpush1.msra.mxu0 0.0
        %593 = vmatprep.subr.mxu0 0.0
        %594 = vmatpush1.msra.mxu0 0.0
        %595 = vmatprep.subr.mxu0 0.0
        %596 = vmatpush1.msra.mxu0 0.0
        %597 = vmatprep.subr.mxu0 0.0
        %598 = vmatpush1.msra.mxu0 0.0
        %599 = vmatprep.subr.mxu0 0.0
        %600 = vmatpush1.msra.mxu0 0.0
        %601 = vmatprep.subr.mxu0 0.0
        %602 = vmatpush1.msra.mxu0 0.0
        %603 = vmatprep.mubr.f32.mxu0 0.0
        %604 = vmatmul.mubr.f32.gmra.mrb[0].mxu0 %v537
        %v605 = vpop.f32.mrb[0].mxu0
        %v606 = vadd.f32 0.0, %v605
        %v607 = vpop.f32.mrb[0].mxu0
        %608 = vdwg.mxu0
        %v609 = vmax.f32 %v606, 0.0
        %v611 = vlaneseq
        %v612 = vshrl.u32 %v611, 7
        %v613 = vsub.s32 0, %v612
        %v614 = vrot.slane %v527, %v613
        %v616 = vmul.f32 %v609, %v614
        %v617 = vmul.f32 %v528, 0.9
        %v618 = vmul.f32 %v616, 0.1
        %v619 = vadd.f32 %v617, %v618
        %v620 = vld [vmem:[#allocation3] sm:$0x3]
        %v621 = vadd.f32 %v619, %v620
        %v622 = vxor.u32 %v621, 2147483648
        %v623 = vmul.f32 %v622, 1.442695
        %v624 = vpow.pop %v623
        %v625 = vadd.f32 %v624, 1.0
        %v626 = vrcp.pop %v625
        %v627 = vmul.f32 1.0, %v626
        %628 = vst.msk [vmem:[%s350] sm:$0x3] %vm518, %v621
        %629 = vst.msk [vmem:[#allocation3] sm:$0x3] %vm518, %v627
        %v631 = vsel %vm535, %v627, 0
        %633 = vmatprep.subr.mxu0 0.0
        %634 = vmatpush1.msra.mxu0 %v523
        %635 = vmatprep.subr.mxu0 0.0
        %636 = vmatpush1.msra.mxu0 %v524
        %637 = vmatprep.subr.mxu0 0.0
        %638 = vmatpush1.msra.mxu0 %v525
        %639 = vmatprep.subr.mxu0 0.0
        %640 = vmatpush1.msra.mxu0 %v526
        %641 = vmatprep.subr.mxu0 0.0
        %642 = vmatpush1.msra.mxu0 0.0
        %643 = vmatprep.subr.mxu0 0.0
        %644 = vmatpush1.msra.mxu0 0.0
        %645 = vmatprep.subr.mxu0 0.0
        %646 = vmatpush1.msra.mxu0 0.0
        %647 = vmatprep.subr.mxu0 0.0
        %648 = vmatpush1.msra.mxu0 0.0
        %649 = vmatprep.subr.mxu0 0.0
        %650 = vmatpush1.msra.mxu0 0.0
        %651 = vmatprep.subr.mxu0 0.0
        %652 = vmatpush1.msra.mxu0 0.0
        %653 = vmatprep.subr.mxu0 0.0
        %654 = vmatpush1.msra.mxu0 0.0
        %655 = vmatprep.subr.mxu0 0.0
        %656 = vmatpush1.msra.mxu0 0.0
        %657 = vmatprep.subr.mxu0 0.0
        %658 = vmatpush1.msra.mxu0 0.0
        %659 = vmatprep.subr.mxu0 0.0
        %660 = vmatpush1.msra.mxu0 0.0
        %661 = vmatprep.subr.mxu0 0.0
        %662 = vmatpush1.msra.mxu0 0.0
        %663 = vmatprep.subr.mxu0 0.0
        %664 = vmatpush1.msra.mxu0 0.0
        %665 = vmatprep.subr.mxu0 0.0
        %666 = vmatpush1.msra.mxu0 0.0
        %667 = vmatprep.subr.mxu0 0.0
        %668 = vmatpush1.msra.mxu0 0.0
        %669 = vmatprep.subr.mxu0 0.0
        %670 = vmatpush1.msra.mxu0 0.0
        %671 = vmatprep.subr.mxu0 0.0
        %672 = vmatpush1.msra.mxu0 0.0
        %673 = vmatprep.subr.mxu0 0.0
        %674 = vmatpush1.msra.mxu0 0.0
        %675 = vmatprep.subr.mxu0 0.0
        %676 = vmatpush1.msra.mxu0 0.0
        %677 = vmatprep.subr.mxu0 0.0
        %678 = vmatpush1.msra.mxu0 0.0
        %679 = vmatprep.subr.mxu0 0.0
        %680 = vmatpush1.msra.mxu0 0.0
        %681 = vmatprep.subr.mxu0 0.0
        %682 = vmatpush1.msra.mxu0 0.0
        %683 = vmatprep.subr.mxu0 0.0
        %684 = vmatpush1.msra.mxu0 0.0
        %685 = vmatprep.subr.mxu0 0.0
        %686 = vmatpush1.msra.mxu0 0.0
        %687 = vmatprep.subr.mxu0 0.0
        %688 = vmatpush1.msra.mxu0 0.0
        %689 = vmatprep.subr.mxu0 0.0
        %690 = vmatpush1.msra.mxu0 0.0
        %691 = vmatprep.subr.mxu0 0.0
        %692 = vmatpush1.msra.mxu0 0.0
        %693 = vmatprep.subr.mxu0 0.0
        %694 = vmatpush1.msra.mxu0 0.0
        %695 = vmatprep.subr.mxu0 0.0
        %696 = vmatpush1.msra.mxu0 0.0
        %697 = vmatprep.mubr.f32.mxu0 0.0
        %698 = vmatmul.mubr.f32.gmra.mrb[0].mxu0 %v631
        %v699 = vpop.f32.mrb[0].mxu0
        %v700 = vadd.f32 0.0, %v699
        %v701 = vpop.f32.mrb[0].mxu0
        %702 = vdwg.mxu0
        %v703 = vmax.f32 %v700, 0.0
        %v704 = vmul.f32 %v703, %v614
        %v705 = vmul.f32 %v621, 0.9
        %v706 = vmul.f32 %v704, 0.1
        %v707 = vadd.f32 %v705, %v706
        %s708 = scalar_lea.vmem [#allocation3], 2
        %v709 = vld [vmem:[%s708] sm:$0x3]
        %v710 = vadd.f32 %v707, %v709
        %v711 = vxor.u32 %v710, 2147483648
        %v712 = vmul.f32 %v711, 1.442695
        %v713 = vpow.pop %v712
        %v714 = vadd.f32 %v713, 1.0
        %v715 = vrcp.pop %v714
        %v716 = vmul.f32 1.0, %v715
        %s717 = scalar_lea.vmem %s350, 2 [#allocation4]
        %718 = vst.msk [vmem:[%s717] sm:$0x3] %vm518, %v710
        %719 = vst.msk [vmem:[%s708] sm:$0x3] %vm518, %v716
        %v721 = vsel %vm535, %v716, 0
        %723 = vmatprep.subr.mxu0 0.0
        %724 = vmatpush1.msra.mxu0 %v523
        %725 = vmatprep.subr.mxu0 0.0
        %726 = vmatpush1.msra.mxu0 %v524
        %727 = vmatprep.subr.mxu0 0.0
        %728 = vmatpush1.msra.mxu0 %v525
        %729 = vmatprep.subr.mxu0 0.0
        %730 = vmatpush1.msra.mxu0 %v526
        %731 = vmatprep.subr.mxu0 0.0
        %732 = vmatpush1.msra.mxu0 0.0
        %733 = vmatprep.subr.mxu0 0.0
        %734 = vmatpush1.msra.mxu0 0.0
        %735 = vmatprep.subr.mxu0 0.0
        %736 = vmatpush1.msra.mxu0 0.0
        %737 = vmatprep.subr.mxu0 0.0
        %738 = vmatpush1.msra.mxu0 0.0
        %739 = vmatprep.subr.mxu0 0.0
        %740 = vmatpush1.msra.mxu0 0.0
        %741 = vmatprep.subr.mxu0 0.0
        %742 = vmatpush1.msra.mxu0 0.0
        %743 = vmatprep.subr.mxu0 0.0
        %744 = vmatpush1.msra.mxu0 0.0
        %745 = vmatprep.subr.mxu0 0.0
        %746 = vmatpush1.msra.mxu0 0.0
        %747 = vmatprep.subr.mxu0 0.0
        %748 = vmatpush1.msra.mxu0 0.0
        %749 = vmatprep.subr.mxu0 0.0
        %750 = vmatpush1.msra.mxu0 0.0
        %751 = vmatprep.subr.mxu0 0.0
        %752 = vmatpush1.msra.mxu0 0.0
        %753 = vmatprep.subr.mxu0 0.0
        %754 = vmatpush1.msra.mxu0 0.0
        %755 = vmatprep.subr.mxu0 0.0
        %756 = vmatpush1.msra.mxu0 0.0
        %757 = vmatprep.subr.mxu0 0.0
        %758 = vmatpush1.msra.mxu0 0.0
        %759 = vmatprep.subr.mxu0 0.0
        %760 = vmatpush1.msra.mxu0 0.0
        %761 = vmatprep.subr.mxu0 0.0
        %762 = vmatpush1.msra.mxu0 0.0
        %763 = vmatprep.subr.mxu0 0.0
        %764 = vmatpush1.msra.mxu0 0.0
        %765 = vmatprep.subr.mxu0 0.0
        %766 = vmatpush1.msra.mxu0 0.0
        %767 = vmatprep.subr.mxu0 0.0
        %768 = vmatpush1.msra.mxu0 0.0
        %769 = vmatprep.subr.mxu0 0.0
        %770 = vmatpush1.msra.mxu0 0.0
        %771 = vmatprep.subr.mxu0 0.0
        %772 = vmatpush1.msra.mxu0 0.0
        %773 = vmatprep.subr.mxu0 0.0
        %774 = vmatpush1.msra.mxu0 0.0
        %775 = vmatprep.subr.mxu0 0.0
        %776 = vmatpush1.msra.mxu0 0.0
        %777 = vmatprep.subr.mxu0 0.0
        %778 = vmatpush1.msra.mxu0 0.0
        %779 = vmatprep.subr.mxu0 0.0
        %780 = vmatpush1.msra.mxu0 0.0
        %781 = vmatprep.subr.mxu0 0.0
        %782 = vmatpush1.msra.mxu0 0.0
        %783 = vmatprep.subr.mxu0 0.0
        %784 = vmatpush1.msra.mxu0 0.0
        %785 = vmatprep.subr.mxu0 0.0
        %786 = vmatpush1.msra.mxu0 0.0
        %787 = vmatprep.mubr.f32.mxu0 0.0
        %788 = vmatmul.mubr.f32.gmra.mrb[0].mxu0 %v721
        %v789 = vpop.f32.mrb[0].mxu0
        %v790 = vadd.f32 0.0, %v789
        %v791 = vpop.f32.mrb[0].mxu0
        %792 = vdwg.mxu0
        %v793 = vmax.f32 %v790, 0.0
        %v794 = vmul.f32 %v793, %v614
        %v795 = vmul.f32 %v710, 0.9
        %v796 = vmul.f32 %v794, 0.1
        %v797 = vadd.f32 %v795, %v796
        %s798 = scalar_lea.vmem [#allocation3], 4
        %v799 = vld [vmem:[%s798] sm:$0x3]
        %v800 = vadd.f32 %v797, %v799
        %v801 = vxor.u32 %v800, 2147483648
        %v802 = vmul.f32 %v801, 1.442695
        %v803 = vpow.pop %v802
        %v804 = vadd.f32 %v803, 1.0
        %v805 = vrcp.pop %v804
        %v806 = vmul.f32 1.0, %v805
        %s807 = scalar_lea.vmem %s350, 4 [#allocation4]
        %808 = vst.msk [vmem:[%s807] sm:$0x3] %vm518, %v800
        %809 = vst.msk [vmem:[%s798] sm:$0x3] %vm518, %v806
        %v811 = vsel %vm535, %v806, 0
        %813 = vmatprep.subr.mxu0 0.0
        %814 = vmatpush1.msra.mxu0 %v523
        %815 = vmatprep.subr.mxu0 0.0
        %816 = vmatpush1.msra.mxu0 %v524
        %817 = vmatprep.subr.mxu0 0.0
        %818 = vmatpush1.msra.mxu0 %v525
        %819 = vmatprep.subr.mxu0 0.0
        %820 = vmatpush1.msra.mxu0 %v526
        %821 = vmatprep.subr.mxu0 0.0
        %822 = vmatpush1.msra.mxu0 0.0
        %823 = vmatprep.subr.mxu0 0.0
        %824 = vmatpush1.msra.mxu0 0.0
        %825 = vmatprep.subr.mxu0 0.0
        %826 = vmatpush1.msra.mxu0 0.0
        %827 = vmatprep.subr.mxu0 0.0
        %828 = vmatpush1.msra.mxu0 0.0
        %829 = vmatprep.subr.mxu0 0.0
        %830 = vmatpush1.msra.mxu0 0.0
        %831 = vmatprep.subr.mxu0 0.0
        %832 = vmatpush1.msra.mxu0 0.0
        %833 = vmatprep.subr.mxu0 0.0
        %834 = vmatpush1.msra.mxu0 0.0
        %835 = vmatprep.subr.mxu0 0.0
        %836 = vmatpush1.msra.mxu0 0.0
        %837 = vmatprep.subr.mxu0 0.0
        %838 = vmatpush1.msra.mxu0 0.0
        %839 = vmatprep.subr.mxu0 0.0
        %840 = vmatpush1.msra.mxu0 0.0
        %841 = vmatprep.subr.mxu0 0.0
        %842 = vmatpush1.msra.mxu0 0.0
        %843 = vmatprep.subr.mxu0 0.0
        %844 = vmatpush1.msra.mxu0 0.0
        %845 = vmatprep.subr.mxu0 0.0
        %846 = vmatpush1.msra.mxu0 0.0
        %847 = vmatprep.subr.mxu0 0.0
        %848 = vmatpush1.msra.mxu0 0.0
        %849 = vmatprep.subr.mxu0 0.0
        %850 = vmatpush1.msra.mxu0 0.0
        %851 = vmatprep.subr.mxu0 0.0
        %852 = vmatpush1.msra.mxu0 0.0
        %853 = vmatprep.subr.mxu0 0.0
        %854 = vmatpush1.msra.mxu0 0.0
        %855 = vmatprep.subr.mxu0 0.0
        %856 = vmatpush1.msra.mxu0 0.0
        %857 = vmatprep.subr.mxu0 0.0
        %858 = vmatpush1.msra.mxu0 0.0
        %859 = vmatprep.subr.mxu0 0.0
        %860 = vmatpush1.msra.mxu0 0.0
        %861 = vmatprep.subr.mxu0 0.0
        %862 = vmatpush1.msra.mxu0 0.0
        %863 = vmatprep.subr.mxu0 0.0
        %864 = vmatpush1.msra.mxu0 0.0
        %865 = vmatprep.subr.mxu0 0.0
        %866 = vmatpush1.msra.mxu0 0.0
        %867 = vmatprep.subr.mxu0 0.0
        %868 = vmatpush1.msra.mxu0 0.0
        %869 = vmatprep.subr.mxu0 0.0
        %870 = vmatpush1.msra.mxu0 0.0
        %871 = vmatprep.subr.mxu0 0.0
        %872 = vmatpush1.msra.mxu0 0.0
        %873 = vmatprep.subr.mxu0 0.0
        %874 = vmatpush1.msra.mxu0 0.0
        %875 = vmatprep.subr.mxu0 0.0
        %876 = vmatpush1.msra.mxu0 0.0
        %877 = vmatprep.mubr.f32.mxu0 0.0
        %878 = vmatmul.mubr.f32.gmra.mrb[0].mxu0 %v811
        %v879 = vpop.f32.mrb[0].mxu0
        %v880 = vadd.f32 0.0, %v879
        %v881 = vpop.f32.mrb[0].mxu0
        %882 = vdwg.mxu0
        %v883 = vmax.f32 %v880, 0.0
        %v884 = vmul.f32 %v883, %v614
        %v885 = vmul.f32 %v800, 0.9
        %v886 = vmul.f32 %v884, 0.1
        %v887 = vadd.f32 %v885, %v886
        %s888 = scalar_lea.vmem [#allocation3], 6
        %v889 = vld [vmem:[%s888] sm:$0x3]
        %v890 = vadd.f32 %v887, %v889
        %v891 = vxor.u32 %v890, 2147483648
        %v892 = vmul.f32 %v891, 1.442695
        %v893 = vpow.pop %v892
        %v894 = vadd.f32 %v893, 1.0
        %v895 = vrcp.pop %v894
        %v896 = vmul.f32 1.0, %v895
        %s897 = scalar_lea.vmem %s350, 6 [#allocation4]
        %898 = vst.msk [vmem:[%s897] sm:$0x3] %vm518, %v890
        %899 = vst.msk [vmem:[%s888] sm:$0x3] %vm518, %v896
        %900 = vst.msk [vmem:[#allocation2] sm:$0x3] %vm518, %v890
        %v901 = vld [vmem:[#allocation3] sm:$0x3]
        %v902 = vld [vmem:[#allocation3 + $0x2] sm:$0x3]
        %v903 = vld [vmem:[#allocation3 + $0x4] sm:$0x3]
        %v904 = vld [vmem:[#allocation3 + $0x6] sm:$0x3]
        %v905 = vld [vmem:[%s6] sm:$0xff]
        %v906 = vld [vmem:[%s6 + $0x8] sm:$0xff]
        %v907 = vld [vmem:[%s6 + $0x10] sm:$0xff]
        %v908 = vld [vmem:[%s6 + $0x18] sm:$0xff]
        %v909 = vld [vmem:[%s7] sm:$0x1]
        %v911 = vlaneseq
        %v912 = vshrl.u32 %v911, 7
        %v913 = vsub.s32 0, %v912
        %v914 = vrot.slane %v909, %v913
        %v920 = vcombine.low %v901, %v902
        %v921 = vcombine.low %v903, %v904
        %v923 = vunpack.c.l.s4 1983009808
        %v924 = vunpack.c.0.s8 %v923
        %v925 = vlaneseq
        %v926 = vshrl.u32 %v925, 7
        %v927 = vsub.s32 %v924, %v926
        %v928 = vrot.slane %v920, %v927
        %v930 = vunpack.c.l.s4 1983009808
        %v931 = vunpack.c.0.s8 %v930
        %v932 = vlaneseq
        %v933 = vshrl.u32 %v932, 7
        %v934 = vsub.s32 %v931, %v933
        %v935 = vrot.slane %v921, %v934
        %v936 = vcombine.low %v928, %v935
        %v937 = vsel %vm535, %v936, 0
        %939 = vmatprep.subr.mxu0 0.0
        %940 = vmatpush1.msra.mxu0 %v905
        %941 = vmatprep.subr.mxu0 0.0
        %942 = vmatpush1.msra.mxu0 %v906
        %943 = vmatprep.subr.mxu0 0.0
        %944 = vmatpush1.msra.mxu0 %v907
        %945 = vmatprep.subr.mxu0 0.0
        %946 = vmatpush1.msra.mxu0 %v908
        %947 = vmatprep.subr.mxu0 0.0
        %948 = vmatpush1.msra.mxu0 0.0
        %949 = vmatprep.subr.mxu0 0.0
        %950 = vmatpush1.msra.mxu0 0.0
        %951 = vmatprep.subr.mxu0 0.0
        %952 = vmatpush1.msra.mxu0 0.0
        %953 = vmatprep.subr.mxu0 0.0
        %954 = vmatpush1.msra.mxu0 0.0
        %955 = vmatprep.subr.mxu0 0.0
        %956 = vmatpush1.msra.mxu0 0.0
        %957 = vmatprep.subr.mxu0 0.0
        %958 = vmatpush1.msra.mxu0 0.0
        %959 = vmatprep.subr.mxu0 0.0
        %960 = vmatpush1.msra.mxu0 0.0
        %961 = vmatprep.subr.mxu0 0.0
        %962 = vmatpush1.msra.mxu0 0.0
        %963 = vmatprep.subr.mxu0 0.0
        %964 = vmatpush1.msra.mxu0 0.0
        %965 = vmatprep.subr.mxu0 0.0
        %966 = vmatpush1.msra.mxu0 0.0
        %967 = vmatprep.subr.mxu0 0.0
        %968 = vmatpush1.msra.mxu0 0.0
        %969 = vmatprep.subr.mxu0 0.0
        %970 = vmatpush1.msra.mxu0 0.0
        %971 = vmatprep.subr.mxu0 0.0
        %972 = vmatpush1.msra.mxu0 0.0
        %973 = vmatprep.subr.mxu0 0.0
        %974 = vmatpush1.msra.mxu0 0.0
        %975 = vmatprep.subr.mxu0 0.0
        %976 = vmatpush1.msra.mxu0 0.0
        %977 = vmatprep.subr.mxu0 0.0
        %978 = vmatpush1.msra.mxu0 0.0
        %979 = vmatprep.subr.mxu0 0.0
        %980 = vmatpush1.msra.mxu0 0.0
        %981 = vmatprep.subr.mxu0 0.0
        %982 = vmatpush1.msra.mxu0 0.0
        %983 = vmatprep.subr.mxu0 0.0
        %984 = vmatpush1.msra.mxu0 0.0
        %985 = vmatprep.subr.mxu0 0.0
        %986 = vmatpush1.msra.mxu0 0.0
        %987 = vmatprep.subr.mxu0 0.0
        %988 = vmatpush1.msra.mxu0 0.0
        %989 = vmatprep.subr.mxu0 0.0
        %990 = vmatpush1.msra.mxu0 0.0
        %991 = vmatprep.subr.mxu0 0.0
        %992 = vmatpush1.msra.mxu0 0.0
        %993 = vmatprep.subr.mxu0 0.0
        %994 = vmatpush1.msra.mxu0 0.0
        %995 = vmatprep.subr.mxu0 0.0
        %996 = vmatpush1.msra.mxu0 0.0
        %997 = vmatprep.subr.mxu0 0.0
        %998 = vmatpush1.msra.mxu0 0.0
        %999 = vmatprep.subr.mxu0 0.0
        %1000 = vmatpush1.msra.mxu0 0.0
        %1001 = vmatprep.subr.mxu0 0.0
        %1002 = vmatpush1.msra.mxu0 0.0
        %1003 = vmatprep.mubr.f32.mxu0 0.0
        %1004 = vmatmul.mubr.f32.gmra.mrb[0].mxu0 %v937
        %v1005 = vpop.f32.mrb[0].mxu0
        %v1006 = vadd.f32 %v914, %v1005
        %v1007 = vpop.f32.mrb[0].mxu0
        %1008 = vdwg.mxu0
        %v1009 = vsel %vm403, %v1006, -inf
        %1010 = vmax.xlane.f32.xlu0 %v1009
        %v1011 = vpop.xlane.xlu0 %1010
        %v1012 = vsub.f32 %v1006, %v1011
        %v1013 = vmul.f32 %v1012, 1.442695
        %v1014 = vpow.pop %v1013
        %v1015 = vsel %vm403, %v1014, 0.0
        %1016 = vadd.xlane.f32.xlu0 %v1015
        %v1017 = vpop.xlane.xlu0 %1016
        %v1018 = vrcp.pop %v1017
        %v1019 = vmul.f32 %v1014, %v1018
        %v1021 = vcombine.high %v1019, %v1019
        %v1023 = vunpack.c.l.s4 1983009808
        %v1024 = vunpack.c.0.s8 %v1023
        %v1025 = vlaneseq
        %v1026 = vshrl.u32 %v1025, 7
        %v1027 = vsub.s32 %v1024, %v1026
        %v1028 = vrot.slane %v1019, %v1027
        %v1030 = vunpack.c.l.s4 1983009808
        %v1031 = vunpack.c.0.s8 %v1030
        %v1032 = vlaneseq
        %v1033 = vshrl.u32 %v1032, 7
        %v1034 = vsub.s32 %v1031, %v1033
        %v1035 = vrot.slane %v1021, %v1034
        %v1036 = vcombine.high %v1028, %v1028
        %v1037 = vcombine.high %v1035, %v1035
        %vm1042 = vcmask 25600
        %1043 = vst.msk [vmem:[%s367] sm:$0x3] %vm1042, %v1028
        %1044 = vst.msk [vmem:[%s367 + $0x2] sm:$0x3] %vm1042, %v1036
        %1045 = vst.msk [vmem:[%s367 + $0x4] sm:$0x3] %vm1042, %v1035
        %1046 = vst.msk [vmem:[%s367 + $0x6] sm:$0x3] %vm1042, %v1037
        %s1047 = smul.u32 4, %s24
        %p1048 = scmp.lt.s32.totalorder %s1047, 7
        %s1049 = scalar_select %p1048, %s1047, 7
        %s1050 = smul.addr %s1049, 2
        %s1051 = scalar_lea.vmem %s8, %s1050
        %s1052 = sand.u32 %s236, 1
        %s1053 = scalar_lea.sflag [#allocation5], %s1052
        %s1054 = sand.u32 %s236, 1
        %s1055 = smul.addr %s1054, 8
        %s1056 = scalar_lea.vmem [#allocation4], %s1055
        // Predicated region
        $region57: #{tpu_custom_call.1} parent=51 // pred_check
          %p1057 = pneg %p220
        $region58: #{tpu_custom_call.1} parent=51 // pred_check_branch
          %1059 = sbr.rel (%p1057) target = $region60
        $region59: #{tpu_custom_call.1} parent=51 // pred_region
          %s1060 = smul.u32 4, %s24
        $region60: #{tpu_custom_call.1} parent=51 // pred_fallthru
          _
        // Predicated region
        $region61: #{tpu_custom_call.1} parent=51 // pred_check
          %p1061 = pneg %p246
        $region62: #{tpu_custom_call.1} parent=51 // pred_check_branch
          %1063 = sbr.rel (%p1061) target = $region64
        $region63: #{tpu_custom_call.1} parent=51 // pred_region
          %s1064 = smul.u32 4, %s24
          %s1066 = ssub.s32 128, 128
          %1067 = vsyncadd %s1053, %s1066
          %s1068 = smul.addr %s1064, 32
          %s1069 = scalar_lea.hbm %s9, %s1068
          %s1070 = sshll.u32 %s1056, 4
          %s1071 = int_to_ptr.vmem [resolvable:$true] %s1070
          %1076 = dma.vmem_to_hbm [thread:$0]  %s1071, 128, %s1069, %s1053, 32, 32, 2
        $region64: #{tpu_custom_call.1} parent=51 // pred_fallthru
          _
      $region52: #{tpu_custom_call.1} parent=5 // pred_fallthru
        _
      %p1077 = scmp.le.s32.totalorder 2, %s19
      // Predicated region
      $region65: #{tpu_custom_call.1} parent=5 // pred_check
        %p1078 = pneg %p1077
      $region66: #{tpu_custom_call.1} parent=5 // pred_check_branch
        %1080 = sbr.rel (%p1078) target = $region68
      $region67: #{tpu_custom_call.1} parent=5 // pred_region
        %s1081 = ssub.s32 %s19, 2
        // Predicated region
        $region69: #{tpu_custom_call.1} parent=67 // pred_check
          %p1082 = pneg %p226
        $region70: #{tpu_custom_call.1} parent=67 // pred_check_branch
          %1084 = sbr.rel (%p1082) target = $region72
        $region71: #{tpu_custom_call.1} parent=67 // pred_region
          %s1085 = smul.u32 4, %s25
          %p1086 = scmp.lt.s32.totalorder %s1085, 7
          %s1087 = scalar_select %p1086, %s1085, 7
          %s1088 = smul.addr %s1087, 2
          %s1089 = scalar_lea.vmem %s8, %s1088
        $region72: #{tpu_custom_call.1} parent=67 // pred_fallthru
          _
        // Predicated region
        $region73: #{tpu_custom_call.1} parent=67 // pred_check
          %p1090 = pneg %p252
        $region74: #{tpu_custom_call.1} parent=67 // pred_check_branch
          %1092 = sbr.rel (%p1090) target = $region76
        $region75: #{tpu_custom_call.1} parent=67 // pred_region
          %s1093 = sand.u32 %s237, 1
          %s1094 = scalar_lea.sflag [#allocation5], %s1093
          %s1095 = sand.u32 %s237, 1
          %s1096 = smul.addr %s1095, 8
          %s1097 = scalar_lea.vmem [#allocation4], %s1096
          %1098 = dma.done %s1094, 128
        $region76: #{tpu_custom_call.1} parent=67 // pred_fallthru
          _
      $region68: #{tpu_custom_call.1} parent=5 // pred_fallthru
        _
    $region6: #{tpu_custom_call.1} parent=1 // loop_footer
      %s23 = sadd.s32 1, %s19
    $region7: #{tpu_custom_call.1} parent=1 // loop_footer_branch
      %18 = sbr.rel target = $region3
    $region8: #{tpu_custom_call.1} parent=1 // loop_exit
      _
    %1099 = vsyncpa [#allocation5], 1
    %s1100 = scalar_lea.sflag [#allocation5], 1
    %1101 = vsyncpa %s1100, 1

</llo_original>
